<compile_context>
chip_gen: v6e
topology: v6e:2x2x1
jax: 0.10.0
libtpu: 0.0.40
codegen_flags: <defaults>
</compile_context>

<pallas_src>
import jax
import jax.numpy as jnp
from jax.experimental import pallas as pl
from jax.experimental.pallas import tpu as pltpu


# ---------------------------------------------------------------------------
# Fused kernel: all GIN layers (grid over layers) + readout at the last layer
# ---------------------------------------------------------------------------
def _fused_gin_kernel(h0_ref, G_ref, S_ref, ea_ref, P_ref, Wp_ref, bp_ref, eps_ref,
                      We_ref, be_ref, W1_ref, b1_ref, W2_ref, b2_ref,
                      h_ref, logp_ref, x1_ref):
    l = pl.program_id(0)
    nlayer = pl.num_programs(0)

    @pl.when(l == 0)
    def _init():
        h_ref[...] = h0_ref[...]          # node_encoder output (carried in VMEM)

    h = h_ref[...]                                                       # [N, Dp] f32

    # edge_encoder: Linear(7 -> D)  (K padded 7 -> 8)
    edge_emb = jnp.dot(ea_ref[...], We_ref[0],
                       preferred_element_type=jnp.float32) + be_ref[0]   # [E, Dp]
    # gather x_j = x[src[e]]  (bf16 one-hot matmul on the MXU, f32 accumulate)
    x_j = jnp.dot(G_ref[...], h.astype(jnp.bfloat16),
                  preferred_element_type=jnp.float32)                    # [E, Dp]
    # message = relu(x_j + edge_embedding)
    msg = jnp.maximum(x_j + edge_emb, 0.0)
    # scatter-add to destination nodes (aggr='add')
    aggr = jnp.dot(S_ref[...], msg.astype(jnp.bfloat16),
                   preferred_element_type=jnp.float32)                   # [N, Dp]

    pre = (1.0 + eps_ref[l, 0]) * h + aggr
    # mlp: Linear(D,2D) -> [BN1 folded] -> ReLU -> Linear(2D,D) -> [per-layer BN folded]
    z1 = jnp.maximum(jnp.dot(pre, W1_ref[0],
                             preferred_element_type=jnp.float32) + b1_ref[0], 0.0)
    z2 = jnp.dot(z1, W2_ref[0], preferred_element_type=jnp.float32) + b2_ref[0]

    @pl.when(l < nlayer - 1)
    def _intermediate():
        # intermediate layers: ReLU then dropout (identity in eval mode)
        h_ref[...] = jnp.maximum(z2, 0.0)

    @pl.when(l == nlayer - 1)
    def _final():
        h_ref[...] = z2                   # last layer: no ReLU (dropout = identity)
        # fused readout: global_add_pool + graph_pred + log_softmax
        x1 = jnp.dot(P_ref[...], z2.astype(jnp.bfloat16),
                     preferred_element_type=jnp.float32)                 # [Gp, Dp]
        logits = jnp.dot(x1, Wp_ref[...],
                         preferred_element_type=jnp.float32) + bp_ref[...]
        m = jnp.max(logits, axis=1, keepdims=True)
        s = logits - m
        lse = jnp.log(jnp.sum(jnp.exp(s), axis=1, keepdims=True))
        logp_ref[...] = s - lse
        x1_ref[...] = x1


# ---------------------------------------------------------------------------
# Helpers
# ---------------------------------------------------------------------------
def _round_up(x, m):
    return ((x + m - 1) // m) * m


def _pad2(x, rows, cols):
    return jnp.pad(x, ((0, rows - x.shape[0]), (0, cols - x.shape[1])))


def _fold_bn(W, b, gamma, beta, mean, var, eps=1e-5):
    """Fold eval-mode BatchNorm1d following Linear(W, b) into (W', b')."""
    s = gamma * jax.lax.rsqrt(var + eps)          # [1, M]
    return W * s, (b - mean) * s + beta


# ---------------------------------------------------------------------------
# Parameters (deterministic synthetic init, same structure as the torch module)
# ---------------------------------------------------------------------------
def init_params(key, nhid, nclass, nlayer):
    ks = jax.random.split(key, 2 + 4 * nlayer)
    params = {
        "node_emb": 0.1 * jax.random.normal(ks[0], (1, nhid), jnp.float32),
        "Wp": 0.1 * jax.random.normal(ks[1], (nhid, nclass), jnp.float32),
        "bp": jnp.zeros((1, nclass), jnp.float32),
        "layers": [],
    }
    for l in range(nlayer):
        ka, kb, kc, _ = ks[2 + 4 * l: 6 + 4 * l]
        lp = {
            "We": 0.1 * jax.random.normal(ka, (7, nhid), jnp.float32),
            "be": jnp.zeros((1, nhid), jnp.float32),
            "eps": jnp.zeros((1, 1), jnp.float32),                      # torch.Tensor([0])
            "W1": 0.1 * jax.random.normal(kb, (nhid, 2 * nhid), jnp.float32),
            "b1": jnp.zeros((1, 2 * nhid), jnp.float32),
            "bn1_g": jnp.ones((1, 2 * nhid), jnp.float32),
            "bn1_b": jnp.zeros((1, 2 * nhid), jnp.float32),
            "bn1_m": jnp.zeros((1, 2 * nhid), jnp.float32),
            "bn1_v": jnp.ones((1, 2 * nhid), jnp.float32),
            "W2": 0.1 * jax.random.normal(kc, (2 * nhid, nhid), jnp.float32),
            "b2": jnp.zeros((1, nhid), jnp.float32),
            "bn2_g": jnp.ones((1, nhid), jnp.float32),
            "bn2_b": jnp.zeros((1, nhid), jnp.float32),
            "bn2_m": jnp.zeros((1, nhid), jnp.float32),
            "bn2_v": jnp.ones((1, nhid), jnp.float32),
        }
        params["layers"].append(lp)
    return params


# ---------------------------------------------------------------------------
# Full ogbGIN forward
# ---------------------------------------------------------------------------
def ogb_gin_forward(params, node_x, edge_index, edge_attr, batch, num_graphs):
    N = node_x.shape[0]
    E = edge_attr.shape[0]
    nhid = params["node_emb"].shape[1]
    nclass = params["Wp"].shape[1]
    layers = params["layers"]
    L = len(layers)

    Dp = _round_up(nhid, 128)          # lane-dense node-feature dim
    Hp = _round_up(2 * nhid, 128)      # lane-dense MLP hidden dim
    Cp = _round_up(nclass, 128)        # lane-dense class dim
    Gp = _round_up(num_graphs, 8)      # sublane-dense graph count
    Kp = 8                             # edge-feature dim padded 7 -> 8

    src, dst = edge_index[0], edge_index[1]
    # one-hot gather / scatter-add / pooling matrices in bf16 (0/1 exact)
    G = jax.nn.one_hot(src, N, dtype=jnp.bfloat16)               # [E, N]  x_j gather
    S = jax.nn.one_hot(dst, N, dtype=jnp.bfloat16).T             # [N, E]  scatter-add
    P = jax.nn.one_hot(batch, Gp, dtype=jnp.bfloat16).T          # [Gp, N] global_add_pool

    # node_encoder: Embedding(1, D) -> every node index is 0
    h0 = _pad2(params["node_emb"][node_x].astype(jnp.float32), N, Dp)   # [N, Dp]
    ea = _pad2(edge_attr.astype(jnp.float32), E, Kp)                    # [E, Kp]

    # stack per-layer weights (BatchNorms folded, shapes padded lane-dense)
    We_a, be_a, W1_a, b1_a, W2_a, b2_a, eps_a = [], [], [], [], [], [], []
    for lp in layers:
        W1f, b1f = _fold_bn(lp["W1"], lp["b1"], lp["bn1_g"], lp["bn1_b"],
                            lp["bn1_m"], lp["bn1_v"])
        W2f, b2f = _fold_bn(lp["W2"], lp["b2"], lp["bn2_g"], lp["bn2_b"],
                            lp["bn2_m"], lp["bn2_v"])
        We_a.append(_pad2(lp["We"], Kp, Dp))
        be_a.append(_pad2(lp["be"], 1, Dp))
        W1_a.append(_pad2(W1f, Dp, Hp))
        b1_a.append(_pad2(b1f, 1, Hp))
        W2_a.append(_pad2(W2f, Hp, Dp))
        b2_a.append(_pad2(b2f, 1, Dp))
        eps_a.append(lp["eps"])
    We_a = jnp.stack(We_a); be_a = jnp.stack(be_a)
    W1_a = jnp.stack(W1_a); b1_a = jnp.stack(b1_a)
    W2_a = jnp.stack(W2_a); b2_a = jnp.stack(b2_a)
    eps_a = jnp.concatenate(eps_a, axis=0)                              # [L, 1]

    Wp = _pad2(params["Wp"], Dp, Cp)
    # padded class columns get a very negative bias -> they vanish from log_softmax
    bp = jnp.full((1, Cp), -1e30, jnp.float32).at[:, :nclass].set(params["bp"])

    def const_spec(shape):
        return pl.BlockSpec(shape, lambda l: (0,) * len(shape))

    def layer_spec(shape):
        return pl.BlockSpec((1,) + shape, lambda l: (l,) + (0,) * len(shape))

    in_specs = [
        const_spec((N, Dp)),        # h0
        const_spec((E, N)),         # G
        const_spec((N, E)),         # S
        const_spec((E, Kp)),        # edge_attr
        const_spec((Gp, N)),        # P
        const_spec((Dp, Cp)),       # Wp
        const_spec((1, Cp)),        # bp
        pl.BlockSpec(memory_space=pltpu.MemorySpace.SMEM),   # eps [L, 1]
        layer_spec((Kp, Dp)),       # We
        layer_spec((1, Dp)),        # be
        layer_spec((Dp, Hp)),       # W1 (BN1 folded)
        layer_spec((1, Hp)),        # b1
        layer_spec((Hp, Dp)),       # W2 (per-layer BN folded)
        layer_spec((1, Dp)),        # b2
    ]
    out_specs = (
        pl.BlockSpec((N, Dp), lambda l: (0, 0)),      # node representation (h carry)
        pl.BlockSpec((Gp, Cp), lambda l: (0, 0)),     # log-probs
        pl.BlockSpec((Gp, Dp), lambda l: (0, 0)),     # pooled graph features
    )
    out_shape = (
        jax.ShapeDtypeStruct((N, Dp), jnp.float32),
        jax.ShapeDtypeStruct((Gp, Cp), jnp.float32),
        jax.ShapeDtypeStruct((Gp, Dp), jnp.float32),
    )

    h_out, logp_p, x1_p = pl.pallas_call(
        _fused_gin_kernel,
        grid=(L,),
        in_specs=in_specs,
        out_specs=out_specs,
        out_shape=out_shape,
        compiler_params=pltpu.CompilerParams(
            dimension_semantics=("arbitrary",),       # layer axis carries h sequentially
            vmem_limit_bytes=32 * 1024 * 1024,        # safe on v5e/v6e (128 MiB) and v7x (64 MiB)
        ),
    )(h0, G, S, ea, P, Wp, bp, eps_a, We_a, be_a, W1_a, b1_a, W2_a, b2_a)

    logp = logp_p[:num_graphs, :nclass]
    x1 = x1_p[:num_graphs, :nhid]
    x2 = h_out[:, :nhid]
    return logp, x1, x2


if __name__ == "__main__":
    key = jax.random.PRNGKey(0)
    N, E, num_graphs = 16, 32, 2       # nodes, edges, graphs in the batch
    nhid, nclass, nlayer = 32, 4, 3    # small shapes consistent with the module

    kp, k1, k2, k3 = jax.random.split(key, 4)
    params = init_params(kp, nhid, nclass, nlayer)

    node_x = jnp.zeros((N,), jnp.int32)                       # Embedding(1, D) indices
    src = jax.random.randint(k1, (E,), 0, N)
    dst = jax.random.randint(k2, (E,), 0, N)
    edge_index = jnp.stack([src, dst], axis=0)                # [2, E]
    edge_attr = jax.random.normal(k3, (E, 7), jnp.float32)    # [E, 7]
    batch = jnp.concatenate([jnp.zeros((N // 2,), jnp.int32),
                             jnp.ones((N - N // 2,), jnp.int32)])

    logp, x1, x2 = ogb_gin_forward(params, node_x, edge_index, edge_attr,
                                   batch, num_graphs)
    jax.block_until_ready((logp, x1, x2))
    assert logp.shape == (num_graphs, nclass)
    assert x1.shape == (num_graphs, nhid)
    assert x2.shape == (N, nhid)
    assert bool(jnp.all(jnp.isfinite(logp)))
    print("KERNEL_OK")
</pallas_src>

<mosaic_0001>
module attributes {stable_mosaic.version = 11 : i64} {
  func.func @_fused_gin_kernel(%arg0: i32, %arg1: memref<16x128xf32, #tpu.memory_space<vmem>>, %arg2: memref<32x16xbf16, #tpu.memory_space<vmem>>, %arg3: memref<16x32xbf16, #tpu.memory_space<vmem>>, %arg4: memref<32x8xf32, #tpu.memory_space<vmem>>, %arg5: memref<8x16xbf16, #tpu.memory_space<vmem>>, %arg6: memref<128x128xf32, #tpu.memory_space<vmem>>, %arg7: memref<1x128xf32, #tpu.memory_space<vmem>>, %arg8: memref<3x1xf32, #tpu.memory_space<smem>>, %arg9: memref<1x8x128xf32, #tpu.memory_space<vmem>>, %arg10: memref<1x1x128xf32, #tpu.memory_space<vmem>>, %arg11: memref<1x128x128xf32, #tpu.memory_space<vmem>>, %arg12: memref<1x1x128xf32, #tpu.memory_space<vmem>>, %arg13: memref<1x128x128xf32, #tpu.memory_space<vmem>>, %arg14: memref<1x1x128xf32, #tpu.memory_space<vmem>>, %arg15: memref<16x128xf32, #tpu.memory_space<vmem>>, %arg16: memref<8x128xf32, #tpu.memory_space<vmem>>, %arg17: memref<8x128xf32, #tpu.memory_space<vmem>>) attributes {dimension_semantics = [#tpu.dimension_semantics<arbitrary>], iteration_bounds = array<i64: 3>, scalar_prefetch = 0 : i64, scratch_operands = 0 : i64, tpu.core_type = #tpu.core_type<tc>, window_params = [{pipeline_mode = #tpu.pipeline_mode<synchronous>, transform_indices = @transform_0, window_bounds = array<i64: 16, 128>}, {pipeline_mode = #tpu.pipeline_mode<synchronous>, transform_indices = @transform_1, window_bounds = array<i64: 32, 16>}, {pipeline_mode = #tpu.pipeline_mode<synchronous>, transform_indices = @transform_2, window_bounds = array<i64: 16, 32>}, {pipeline_mode = #tpu.pipeline_mode<synchronous>, transform_indices = @transform_3, window_bounds = array<i64: 32, 8>}, {pipeline_mode = #tpu.pipeline_mode<synchronous>, transform_indices = @transform_4, window_bounds = array<i64: 8, 16>}, {pipeline_mode = #tpu.pipeline_mode<synchronous>, transform_indices = @transform_5, window_bounds = array<i64: 128, 128>}, {pipeline_mode = #tpu.pipeline_mode<synchronous>, transform_indices = @transform_6, window_bounds = array<i64: 1, 128>}, {transform_indices = @transform_7, window_bounds = array<i64: 3, 1>}, {transform_indices = @transform_8, window_bounds = array<i64: 1, 8, 128>}, {transform_indices = @transform_9, window_bounds = array<i64: 1, 1, 128>}, {transform_indices = @transform_10, window_bounds = array<i64: 1, 128, 128>}, {transform_indices = @transform_11, window_bounds = array<i64: 1, 1, 128>}, {transform_indices = @transform_12, window_bounds = array<i64: 1, 128, 128>}, {transform_indices = @transform_13, window_bounds = array<i64: 1, 1, 128>}, {pipeline_mode = #tpu.pipeline_mode<synchronous>, transform_indices = @transform_14, window_bounds = array<i64: 16, 128>}, {pipeline_mode = #tpu.pipeline_mode<synchronous>, transform_indices = @transform_15, window_bounds = array<i64: 8, 128>}, {pipeline_mode = #tpu.pipeline_mode<synchronous>, transform_indices = @transform_16, window_bounds = array<i64: 8, 128>}]} {
    %c0_i32 = arith.constant 0 : i32
    %0 = arith.cmpi eq, %arg0, %c0_i32 : i32
    %1 = arith.extui %0 : i1 to i32
    %c0_i32_0 = arith.constant 0 : i32
    %2 = arith.cmpi ne, %1, %c0_i32_0 : i32
    scf.if %2 {
      %c0_37 = arith.constant 0 : index
      %c0_38 = arith.constant 0 : index
      %49 = vector.load %arg1[%c0_37, %c0_38] : memref<16x128xf32, #tpu.memory_space<vmem>>, vector<16x128xf32>
      %c0_39 = arith.constant 0 : index
      %c0_40 = arith.constant 0 : index
      %50 = vector.load %arg15[%c0_39, %c0_40] : memref<16x128xf32, #tpu.memory_space<vmem>>, vector<16x128xf32>
      tpu.vector_store %arg15[%c0_39, %c0_40], %49 {strides = array<i32>} : memref<16x128xf32, #tpu.memory_space<vmem>>, vector<16x128xf32>,
    } else {
    }
    %c0 = arith.constant 0 : index
    %c0_1 = arith.constant 0 : index
    %3 = vector.load %arg15[%c0, %c0_1] : memref<16x128xf32, #tpu.memory_space<vmem>>, vector<16x128xf32>
    %c0_2 = arith.constant 0 : index
    %c0_3 = arith.constant 0 : index
    %4 = vector.load %arg4[%c0_2, %c0_3] : memref<32x8xf32, #tpu.memory_space<vmem>>, vector<32x8xf32>
    %c0_4 = arith.constant 0 : index
    %c0_5 = arith.constant 0 : index
    %c0_6 = arith.constant 0 : index
    %5 = vector.load %arg9[%c0_4, %c0_5, %c0_6] : memref<1x8x128xf32, #tpu.memory_space<vmem>>, vector<1x8x128xf32>
    %6 = vector.shape_cast %5 : vector<1x8x128xf32> to vector<8x128xf32>
    %cst = arith.constant dense<0.000000e+00> : vector<32x128xf32>
    %7 = tpu.matmul %4, %6, %cst {dimension_numbers = #tpu.dot_dimension_numbers<[1], [0], [0], [1], [0, 0, 1, 1], [], []>} : vector<32x8xf32>, vector<8x128xf32>, vector<32x128xf32> -> vector<32x128xf32>
    %c0_7 = arith.constant 0 : index
    %c0_8 = arith.constant 0 : index
    %c0_9 = arith.constant 0 : index
    %8 = vector.load %arg10[%c0_7, %c0_8, %c0_9] : memref<1x1x128xf32, #tpu.memory_space<vmem>>, vector<1x1x128xf32>
    %9 = vector.shape_cast %8 : vector<1x1x128xf32> to vector<1x128xf32>
    %10 = vector.broadcast %9 : vector<1x128xf32> to vector<32x128xf32>
    %11 = arith.addf %7, %10 : vector<32x128xf32>
    %c0_10 = arith.constant 0 : index
    %c0_11 = arith.constant 0 : index
    %12 = vector.load %arg2[%c0_10, %c0_11] : memref<32x16xbf16, #tpu.memory_space<vmem>>, vector<32x16xbf16>
    %13 = arith.truncf %3 : vector<16x128xf32> to vector<16x128xbf16>
    %cst_12 = arith.constant dense<0.000000e+00> : vector<32x128xf32>
    %14 = tpu.matmul %12, %13, %cst_12 {dimension_numbers = #tpu.dot_dimension_numbers<[1], [0], [0], [1], [0, 0, 1, 1], [], []>} : vector<32x16xbf16>, vector<16x128xbf16>, vector<32x128xf32> -> vector<32x128xf32>
    %15 = arith.addf %14, %11 : vector<32x128xf32>
    %cst_13 = arith.constant 0.000000e+00 : f32
    %16 = vector.broadcast %cst_13 : f32 to vector<32x128xf32>
    %17 = arith.maximumf %15, %16 : vector<32x128xf32>
    %c0_14 = arith.constant 0 : index
    %c0_15 = arith.constant 0 : index
    %18 = vector.load %arg3[%c0_14, %c0_15] : memref<16x32xbf16, #tpu.memory_space<vmem>>, vector<16x32xbf16>
    %19 = arith.truncf %17 : vector<32x128xf32> to vector<32x128xbf16>
    %cst_16 = arith.constant dense<0.000000e+00> : vector<16x128xf32>
    %20 = tpu.matmul %18, %19, %cst_16 {dimension_numbers = #tpu.dot_dimension_numbers<[1], [0], [0], [1], [0, 0, 1, 1], [], []>} : vector<16x32xbf16>, vector<32x128xbf16>, vector<16x128xf32> -> vector<16x128xf32>
    %21 = arith.index_cast %arg0 : i32 to index
    %c0_17 = arith.constant 0 : index
    %22 = memref.load %arg8[%21, %c0_17] : memref<3x1xf32, #tpu.memory_space<smem>>
    %cst_18 = arith.constant 1.000000e+00 : f32
    %23 = arith.addf %cst_18, %22 : f32
    %24 = vector.broadcast %23 : f32 to vector<16x128xf32>
    %25 = arith.mulf %24, %3 : vector<16x128xf32>
    %26 = arith.addf %25, %20 : vector<16x128xf32>
    %c0_19 = arith.constant 0 : index
    %c0_20 = arith.constant 0 : index
    %c0_21 = arith.constant 0 : index
    %27 = vector.load %arg11[%c0_19, %c0_20, %c0_21] : memref<1x128x128xf32, #tpu.memory_space<vmem>>, vector<1x128x128xf32>
    %28 = vector.shape_cast %27 : vector<1x128x128xf32> to vector<128x128xf32>
    %cst_22 = arith.constant dense<0.000000e+00> : vector<16x128xf32>
    %29 = tpu.matmul %26, %28, %cst_22 {dimension_numbers = #tpu.dot_dimension_numbers<[1], [0], [0], [1], [0, 0, 1, 1], [], []>} : vector<16x128xf32>, vector<128x128xf32>, vector<16x128xf32> -> vector<16x128xf32>
    %c0_23 = arith.constant 0 : index
    %c0_24 = arith.constant 0 : index
    %c0_25 = arith.constant 0 : index
    %30 = vector.load %arg12[%c0_23, %c0_24, %c0_25] : memref<1x1x128xf32, #tpu.memory_space<vmem>>, vector<1x1x128xf32>
    %31 = vector.shape_cast %30 : vector<1x1x128xf32> to vector<1x128xf32>
    %32 = vector.broadcast %31 : vector<1x128xf32> to vector<16x128xf32>
    %33 = arith.addf %29, %32 : vector<16x128xf32>
    %cst_26 = arith.constant 0.000000e+00 : f32
    %34 = vector.broadcast %cst_26 : f32 to vector<16x128xf32>
    %35 = arith.maximumf %33, %34 : vector<16x128xf32>
    %c0_27 = arith.constant 0 : index
    %c0_28 = arith.constant 0 : index
    %c0_29 = arith.constant 0 : index
    %36 = vector.load %arg13[%c0_27, %c0_28, %c0_29] : memref<1x128x128xf32, #tpu.memory_space<vmem>>, vector<1x128x128xf32>
    %37 = vector.shape_cast %36 : vector<1x128x128xf32> to vector<128x128xf32>
    %cst_30 = arith.constant dense<0.000000e+00> : vector<16x128xf32>
    %38 = tpu.matmul %35, %37, %cst_30 {dimension_numbers = #tpu.dot_dimension_numbers<[1], [0], [0], [1], [0, 0, 1, 1], [], []>} : vector<16x128xf32>, vector<128x128xf32>, vector<16x128xf32> -> vector<16x128xf32>
    %c0_31 = arith.constant 0 : index
    %c0_32 = arith.constant 0 : index
    %c0_33 = arith.constant 0 : index
    %39 = vector.load %arg14[%c0_31, %c0_32, %c0_33] : memref<1x1x128xf32, #tpu.memory_space<vmem>>, vector<1x1x128xf32>
    %40 = vector.shape_cast %39 : vector<1x1x128xf32> to vector<1x128xf32>
    %41 = vector.broadcast %40 : vector<1x128xf32> to vector<16x128xf32>
    %42 = arith.addf %38, %41 : vector<16x128xf32>
    %c2_i32 = arith.constant 2 : i32
    %43 = arith.cmpi slt, %arg0, %c2_i32 : i32
    %44 = arith.extui %43 : i1 to i32
    %c0_i32_34 = arith.constant 0 : i32
    %45 = arith.cmpi ne, %44, %c0_i32_34 : i32
    scf.if %45 {
      %cst_37 = arith.constant 0.000000e+00 : f32
      %49 = vector.broadcast %cst_37 : f32 to vector<16x128xf32>
      %50 = arith.maximumf %42, %49 : vector<16x128xf32>
      %c0_38 = arith.constant 0 : index
      %c0_39 = arith.constant 0 : index
      %51 = vector.load %arg15[%c0_38, %c0_39] : memref<16x128xf32, #tpu.memory_space<vmem>>, vector<16x128xf32>
      tpu.vector_store %arg15[%c0_38, %c0_39], %50 {strides = array<i32>} : memref<16x128xf32, #tpu.memory_space<vmem>>, vector<16x128xf32>,
    } else {
    }
    %c2_i32_35 = arith.constant 2 : i32
    %46 = arith.cmpi eq, %arg0, %c2_i32_35 : i32
    %47 = arith.extui %46 : i1 to i32
    %c0_i32_36 = arith.constant 0 : i32
    %48 = arith.cmpi ne, %47, %c0_i32_36 : i32
    scf.if %48 {
      %c0_37 = arith.constant 0 : index
      %c0_38 = arith.constant 0 : index
      %49 = vector.load %arg15[%c0_37, %c0_38] : memref<16x128xf32, #tpu.memory_space<vmem>>, vector<16x128xf32>
      tpu.vector_store %arg15[%c0_37, %c0_38], %42 {strides = array<i32>} : memref<16x128xf32, #tpu.memory_space<vmem>>, vector<16x128xf32>,
      %c0_39 = arith.constant 0 : index
      %c0_40 = arith.constant 0 : index
      %50 = vector.load %arg5[%c0_39, %c0_40] : memref<8x16xbf16, #tpu.memory_space<vmem>>, vector<8x16xbf16>
      %51 = arith.truncf %42 : vector<16x128xf32> to vector<16x128xbf16>
      %cst_41 = arith.constant dense<0.000000e+00> : vector<8x128xf32>
      %52 = tpu.matmul %50, %51, %cst_41 {dimension_numbers = #tpu.dot_dimension_numbers<[1], [0], [0], [1], [0, 0, 1, 1], [], []>} : vector<8x16xbf16>, vector<16x128xbf16>, vector<8x128xf32> -> vector<8x128xf32>
      %c0_42 = arith.constant 0 : index
      %c0_43 = arith.constant 0 : index
      %53 = vector.load %arg6[%c0_42, %c0_43] : memref<128x128xf32, #tpu.memory_space<vmem>>, vector<128x128xf32>
      %cst_44 = arith.constant dense<0.000000e+00> : vector<8x128xf32>
      %54 = tpu.matmul %52, %53, %cst_44 {dimension_numbers = #tpu.dot_dimension_numbers<[1], [0], [0], [1], [0, 0, 1, 1], [], []>} : vector<8x128xf32>, vector<128x128xf32>, vector<8x128xf32> -> vector<8x128xf32>
      %c0_45 = arith.constant 0 : index
      %c0_46 = arith.constant 0 : index
      %55 = vector.load %arg7[%c0_45, %c0_46] : memref<1x128xf32, #tpu.memory_space<vmem>>, vector<1x128xf32>
      %56 = vector.broadcast %55 : vector<1x128xf32> to vector<8x128xf32>
      %57 = arith.addf %54, %56 : vector<8x128xf32>
      %cst_47 = arith.constant dense<0xFF800000> : vector<8xf32>
      %58 = vector.multi_reduction <maximumf>, %57, %cst_47 [1] : vector<8x128xf32> to vector<8xf32>
      %59 = vector.shape_cast %58 : vector<8xf32> to vector<8x1xf32>
      %60 = vector.broadcast %59 : vector<8x1xf32> to vector<8x128xf32>
      %61 = arith.subf %57, %60 : vector<8x128xf32>
      %62 = math.exp %61 : vector<8x128xf32>
      %cst_48 = arith.constant dense<0.000000e+00> : vector<8xf32>
      %63 = vector.multi_reduction <add>, %62, %cst_48 [1] : vector<8x128xf32> to vector<8xf32>
      %64 = vector.shape_cast %63 : vector<8xf32> to vector<8x1xf32>
      %65 = math.log %64 : vector<8x1xf32>
      %66 = vector.broadcast %65 : vector<8x1xf32> to vector<8x128xf32>
      %67 = arith.subf %61, %66 : vector<8x128xf32>
      %c0_49 = arith.constant 0 : index
      %c0_50 = arith.constant 0 : index
      %68 = vector.load %arg16[%c0_49, %c0_50] : memref<8x128xf32, #tpu.memory_space<vmem>>, vector<8x128xf32>
      tpu.vector_store %arg16[%c0_49, %c0_50], %67 {strides = array<i32>} : memref<8x128xf32, #tpu.memory_space<vmem>>, vector<8x128xf32>,
      %c0_51 = arith.constant 0 : index
      %c0_52 = arith.constant 0 : index
      %69 = vector.load %arg17[%c0_51, %c0_52] : memref<8x128xf32, #tpu.memory_space<vmem>>, vector<8x128xf32>
      tpu.vector_store %arg17[%c0_51, %c0_52], %52 {strides = array<i32>} : memref<8x128xf32, #tpu.memory_space<vmem>>, vector<8x128xf32>,
    } else {
    }
    return
  }
  func.func @transform_0(%arg0: i32) -> (i32, i32) {
    %c0_i32 = arith.constant 0 : i32
    %c0_i32_0 = arith.constant 0 : i32
    %c0_i32_1 = arith.constant 0 : i32
    return %c0_i32, %c0_i32_0 : i32, i32
  }
  func.func @transform_1(%arg0: i32) -> (i32, i32) {
    %c0_i32 = arith.constant 0 : i32
    %c0_i32_0 = arith.constant 0 : i32
    %c0_i32_1 = arith.constant 0 : i32
    return %c0_i32, %c0_i32_0 : i32, i32
  }
  func.func @transform_2(%arg0: i32) -> (i32, i32) {
    %c0_i32 = arith.constant 0 : i32
    %c0_i32_0 = arith.constant 0 : i32
    %c0_i32_1 = arith.constant 0 : i32
    return %c0_i32, %c0_i32_0 : i32, i32
  }
  func.func @transform_3(%arg0: i32) -> (i32, i32) {
    %c0_i32 = arith.constant 0 : i32
    %c0_i32_0 = arith.constant 0 : i32
    %c0_i32_1 = arith.constant 0 : i32
    return %c0_i32, %c0_i32_0 : i32, i32
  }
  func.func @transform_4(%arg0: i32) -> (i32, i32) {
    %c0_i32 = arith.constant 0 : i32
    %c0_i32_0 = arith.constant 0 : i32
    %c0_i32_1 = arith.constant 0 : i32
    return %c0_i32, %c0_i32_0 : i32, i32
  }
  func.func @transform_5(%arg0: i32) -> (i32, i32) {
    %c0_i32 = arith.constant 0 : i32
    %c0_i32_0 = arith.constant 0 : i32
    %c0_i32_1 = arith.constant 0 : i32
    return %c0_i32, %c0_i32_0 : i32, i32
  }
  func.func @transform_6(%arg0: i32) -> (i32, i32) {
    %c0_i32 = arith.constant 0 : i32
    %c0_i32_0 = arith.constant 0 : i32
    %c0_i32_1 = arith.constant 0 : i32
    return %c0_i32, %c0_i32_0 : i32, i32
  }
  func.func @transform_7(%arg0: i32) -> (i32, i32) {
    %c0_i32 = arith.constant 0 : i32
    %c0_i32_0 = arith.constant 0 : i32
    %c0_i32_1 = arith.constant 0 : i32
    return %c0_i32, %c0_i32_0 : i32, i32
  }
  func.func @transform_8(%arg0: i32) -> (i32, i32, i32) {
    %c0_i32 = arith.constant 0 : i32
    %c0_i32_0 = arith.constant 0 : i32
    %c0_i32_1 = arith.constant 0 : i32
    return %arg0, %c0_i32, %c0_i32_0 : i32, i32, i32
  }
  func.func @transform_9(%arg0: i32) -> (i32, i32, i32) {
    %c0_i32 = arith.constant 0 : i32
    %c0_i32_0 = arith.constant 0 : i32
    %c0_i32_1 = arith.constant 0 : i32
    return %arg0, %c0_i32, %c0_i32_0 : i32, i32, i32
  }
  func.func @transform_10(%arg0: i32) -> (i32, i32, i32) {
    %c0_i32 = arith.constant 0 : i32
    %c0_i32_0 = arith.constant 0 : i32
    %c0_i32_1 = arith.constant 0 : i32
    return %arg0, %c0_i32, %c0_i32_0 : i32, i32, i32
  }
  func.func @transform_11(%arg0: i32) -> (i32, i32, i32) {
    %c0_i32 = arith.constant 0 : i32
    %c0_i32_0 = arith.constant 0 : i32
    %c0_i32_1 = arith.constant 0 : i32
    return %arg0, %c0_i32, %c0_i32_0 : i32, i32, i32
  }
  func.func @transform_12(%arg0: i32) -> (i32, i32, i32) {
    %c0_i32 = arith.constant 0 : i32
    %c0_i32_0 = arith.constant 0 : i32
    %c0_i32_1 = arith.constant 0 : i32
    return %arg0, %c0_i32, %c0_i32_0 : i32, i32, i32
  }
  func.func @transform_13(%arg0: i32) -> (i32, i32, i32) {
    %c0_i32 = arith.constant 0 : i32
    %c0_i32_0 = arith.constant 0 : i32
    %c0_i32_1 = arith.constant 0 : i32
    return %arg0, %c0_i32, %c0_i32_0 : i32, i32, i32
  }
  func.func @transform_14(%arg0: i32) -> (i32, i32) {
    %c0_i32 = arith.constant 0 : i32
    %c0_i32_0 = arith.constant 0 : i32
    %c0_i32_1 = arith.constant 0 : i32
    return %c0_i32, %c0_i32_0 : i32, i32
  }
  func.func @transform_15(%arg0: i32) -> (i32, i32) {
    %c0_i32 = arith.constant 0 : i32
    %c0_i32_0 = arith.constant 0 : i32
    %c0_i32_1 = arith.constant 0 : i32
    return %c0_i32, %c0_i32_0 : i32, i32
  }
  func.func @transform_16(%arg0: i32) -> (i32, i32) {
    %c0_i32 = arith.constant 0 : i32
    %c0_i32_0 = arith.constant 0 : i32
    %c0_i32_1 = arith.constant 0 : i32
    return %c0_i32, %c0_i32_0 : i32, i32
  }
}

</mosaic_0001>

<llo_original>
// kernel: tpu_custom_call.1
$region0: #{tpu_custom_call.1}
  #allocation0 [shape = 'u32[]', space=smem, size = 0x4, offset = 0x4, fixed_abs, tag = 'smem constant byte address 0x4 - core index']
  #allocation1 [shape = 'u32[144,128]{1,0:T(1,128)}', space=vmem, size = 0x12000, scoped, tag = 'internal scratch']
  %s0 = inlined_call_operand.vmem [shape: f32[16,128], index: 0, kind: input, shape index: {}]
  %s1 = inlined_call_operand.vmem [shape: bf16[32,16], index: 1, kind: input, shape index: {}]
  %s2 = inlined_call_operand.vmem [shape: bf16[16,32], index: 2, kind: input, shape index: {}]
  %s3 = inlined_call_operand.vmem [shape: f32[32,8], index: 3, kind: input, shape index: {}]
  %s4 = inlined_call_operand.vmem [shape: bf16[8,16], index: 4, kind: input, shape index: {}]
  %s5 = inlined_call_operand.hbm [shape: f32[128,128], index: 5, kind: input, shape index: {}]
  %s6 = inlined_call_operand.vmem [shape: f32[1,128], index: 6, kind: input, shape index: {}]
  %s7 = inlined_call_operand.vmem [shape: f32[3,1], index: 7, kind: input, shape index: {}]
  %s8 = inlined_call_operand.vmem [shape: f32[3,8,128], index: 8, kind: input, shape index: {}]
  %s9 = inlined_call_operand.vmem [shape: f32[3,1,128], index: 9, kind: input, shape index: {}]
  %s10 = inlined_call_operand.hbm [shape: f32[3,128,128], index: 10, kind: input, shape index: {}]
  %s11 = inlined_call_operand.vmem [shape: f32[3,1,128], index: 11, kind: input, shape index: {}]
  %s12 = inlined_call_operand.hbm [shape: f32[3,128,128], index: 12, kind: input, shape index: {}]
  %s13 = inlined_call_operand.vmem [shape: f32[3,1,128], index: 13, kind: input, shape index: {}]
  %s14 = inlined_call_operand.hbm [shape: f32[16,128], index: 14, kind: output, shape index: {0}]
  %s15 = inlined_call_operand.hbm [shape: f32[8,128], index: 15, kind: output, shape index: {1}]
  %s16 = inlined_call_operand.hbm [shape: f32[8,128], index: 16, kind: output, shape index: {2}]
  %17 = xla_tuple %s14, %s15, %s16
  %s18 = sld [smem:[#allocation0]]
  $region133: #{tpu_custom_call.1} parent=0
    _
  %s20 = ssub.s32 1, %s18
  %s21 = scalar_select 0, %s20, %s18
  $region1: #{tpu_custom_call.1} parent=0
    #allocation2 [shape = 'u8[65536]{0}', space=vmem, size = 0x10000, scoped, tag = 'input window, operand 5, single buffered']
    #allocation3 [shape = 's32[2]{0}', space=sflag, size = 0x8, scoped, tag = 'scoped memory for tpu_custom_call.1']
    #allocation4 [shape = 's32[2]{0}', space=sflag, size = 0x8, scoped, tag = 'scoped memory for tpu_custom_call.1']
    #allocation5 [shape = 's32[2]{0}', space=sflag, size = 0x8, scoped, tag = 'scoped memory for tpu_custom_call.1']
    #allocation6 [shape = 'u8[2048]{0}', space=smem, size = 0x800, scoped, tag = 'input window, operand 7, single buffered']
    #allocation7 [shape = 'u8[131072]{0}', space=vmem, size = 0x20000, scoped, tag = 'input window, operand 10']
    #allocation8 [shape = 's32[2]{0}', space=sflag, size = 0x8, scoped, tag = 'scoped memory for tpu_custom_call.1']
    #allocation9 [shape = 'u8[131072]{0}', space=vmem, size = 0x20000, scoped, tag = 'input window, operand 12']
    #allocation10 [shape = 'u8[8192]{0}', space=vmem, size = 0x2000, scoped, tag = 'output window, operand 0, single buffered']
    #allocation11 [shape = 'u8[4096]{0}', space=vmem, size = 0x1000, scoped, tag = 'output window, operand 1, single buffered']
    #allocation12 [shape = 's32[1]{0}', space=sflag, size = 0x4, scoped, tag = 'scoped memory for tpu_custom_call.1']
    #allocation13 [shape = 'u8[4096]{0}', space=vmem, size = 0x1000, scoped, tag = 'output window, operand 2, single buffered']
    %22 = vsyncpa [#allocation3], 0
    %23 = vsyncpa [#allocation5], 0
    %24 = vsyncpa [#allocation8], 0
    %s25 = scalar_lea.sflag [#allocation8], 1
    %26 = vsyncpa %s25, 0
    %27 = vsyncpa [#allocation4], 0
    %28 = vsyncpa [#allocation12], 0
    loop: start=0, step=1, limit=5
    $region2: #{tpu_custom_call.1} parent=1 // loop_pre_header
      _
    $region3: #{tpu_custom_call.1} parent=1 // loop_header
      %s30 = sphi 0, %s34
      %p31 = scmp.ge.s32.totalorder %s30, 5
      %s38 = sphi 0, %s38
      %s40 = sphi 0, %s38
      %s41 = sphi 0, %s40
      %s55 = sphi 0, %s41
      %s59 = sphi 0, %s59
      %s61 = sphi 0, %s59
      %s62 = sphi 0, %s61
      %s76 = sphi 0, %s62
      %s80 = sphi 0, %s80
      %s82 = sphi 0, %s80
      %s83 = sphi 0, %s82
      %s97 = sphi 0, %s83
      %s101 = sphi 0, %s101
      %s103 = sphi 0, %s101
      %s104 = sphi 0, %s103
      %s118 = sphi 0, %s104
      %s122 = sphi 0, %s122
      %s124 = sphi 0, %s122
      %s125 = sphi 0, %s124
      %s139 = sphi 0, %s125
      %s143 = sphi 0, %s143
      %s145 = sphi 0, %s143
      %s146 = sphi 0, %s145
      %s160 = sphi 0, %s146
      %s164 = sphi 0, %s164
      %s166 = sphi 0, %s164
      %s167 = sphi 0, %s166
      %s181 = sphi 0, %s167
      %s185 = sphi 0, %s185
      %s187 = sphi 0, %s185
      %s188 = sphi 0, %s187
      %s202 = sphi 0, %s188
      %s208 = sphi 0, %s210
      %s211 = sphi 0, %s208
      %s212 = sphi 0, %s211
      %s228 = sphi 0, %s212
      %s234 = sphi 0, %s236
      %s237 = sphi 0, %s234
      %s238 = sphi 0, %s237
      %s254 = sphi 0, %s238
      %s260 = sphi 0, %s262
      %s263 = sphi 0, %s260
      %s264 = sphi 0, %s263
      %s280 = sphi 0, %s264
      %s286 = sphi 0, %s288
      %s289 = sphi 0, %s286
      %s290 = sphi 0, %s289
      %s306 = sphi 0, %s290
      %s312 = sphi 0, %s314
      %s315 = sphi 0, %s312
      %s316 = sphi 0, %s315
      %s332 = sphi 0, %s316
      %s338 = sphi 0, %s340
      %s341 = sphi 0, %s338
      %s342 = sphi 0, %s341
      %s358 = sphi 0, %s342
      %s362 = sphi 0, %s362
      %s364 = sphi 0, %s362
      %s365 = sphi 0, %s364
      %s379 = sphi 0, %s365
      %s383 = sphi 0, %s383
      %s385 = sphi 0, %s383
      %s386 = sphi 0, %s385
      %s400 = sphi 0, %s386
      %s404 = sphi 0, %s404
      %s406 = sphi 0, %s404
      %s407 = sphi 0, %s406
      %s421 = sphi 0, %s407
    $region4: #{tpu_custom_call.1} parent=1 // loop_header_branch
      %33 = sbr.rel (%p31) target = $region8
    $region5: #{tpu_custom_call.1} parent=1 // loop_body
      %s35 = ssub.s32 %s30, 1
      %s36 = ssub.s32 %s30, 2
      %s37 = sadd.s32 %s30, 1
      %s39 = sadd.s32 %s38, 1
      %p42 = scmp.eq.s32.totalorder %s30, 2
      %p43 = scmp.ne.s32.totalorder %s38, %s40
      %p44 = scmp.eq.s32.totalorder %s30, 0
      %p45 = por %p43, %p44
      %p46 = scmp.ne.s32.totalorder %s38, %s40
      %p47 = scmp.eq.s32.totalorder %s35, 2
      %p48 = por %p46, %p47
      %p49 = scmp.ne.s32.totalorder %s40, %s41
      %p50 = scmp.eq.s32.totalorder %s35, 0
      %p51 = por %p49, %p50
      %p52 = scmp.ne.s32.totalorder %s40, %s41
      %p53 = scmp.eq.s32.totalorder %s36, 2
      %p54 = por %p52, %p53
      %p56 = scmp.ne.s32.totalorder %s41, %s55
      %p57 = scmp.eq.s32.totalorder %s36, 0
      %p58 = por %p56, %p57
      %s60 = sadd.s32 %s59, 1
      %p63 = scmp.eq.s32.totalorder %s30, 2
      %p64 = scmp.ne.s32.totalorder %s59, %s61
      %p65 = scmp.eq.s32.totalorder %s30, 0
      %p66 = por %p64, %p65
      %p67 = scmp.ne.s32.totalorder %s59, %s61
      %p68 = scmp.eq.s32.totalorder %s35, 2
      %p69 = por %p67, %p68
      %p70 = scmp.ne.s32.totalorder %s61, %s62
      %p71 = scmp.eq.s32.totalorder %s35, 0
      %p72 = por %p70, %p71
      %p73 = scmp.ne.s32.totalorder %s61, %s62
      %p74 = scmp.eq.s32.totalorder %s36, 2
      %p75 = por %p73, %p74
      %p77 = scmp.ne.s32.totalorder %s62, %s76
      %p78 = scmp.eq.s32.totalorder %s36, 0
      %p79 = por %p77, %p78
      %s81 = sadd.s32 %s80, 1
      %p84 = scmp.eq.s32.totalorder %s30, 2
      %p85 = scmp.ne.s32.totalorder %s80, %s82
      %p86 = scmp.eq.s32.totalorder %s30, 0
      %p87 = por %p85, %p86
      %p88 = scmp.ne.s32.totalorder %s80, %s82
      %p89 = scmp.eq.s32.totalorder %s35, 2
      %p90 = por %p88, %p89
      %p91 = scmp.ne.s32.totalorder %s82, %s83
      %p92 = scmp.eq.s32.totalorder %s35, 0
      %p93 = por %p91, %p92
      %p94 = scmp.ne.s32.totalorder %s82, %s83
      %p95 = scmp.eq.s32.totalorder %s36, 2
      %p96 = por %p94, %p95
      %p98 = scmp.ne.s32.totalorder %s83, %s97
      %p99 = scmp.eq.s32.totalorder %s36, 0
      %p100 = por %p98, %p99
      %s102 = sadd.s32 %s101, 1
      %p105 = scmp.eq.s32.totalorder %s30, 2
      %p106 = scmp.ne.s32.totalorder %s101, %s103
      %p107 = scmp.eq.s32.totalorder %s30, 0
      %p108 = por %p106, %p107
      %p109 = scmp.ne.s32.totalorder %s101, %s103
      %p110 = scmp.eq.s32.totalorder %s35, 2
      %p111 = por %p109, %p110
      %p112 = scmp.ne.s32.totalorder %s103, %s104
      %p113 = scmp.eq.s32.totalorder %s35, 0
      %p114 = por %p112, %p113
      %p115 = scmp.ne.s32.totalorder %s103, %s104
      %p116 = scmp.eq.s32.totalorder %s36, 2
      %p117 = por %p115, %p116
      %p119 = scmp.ne.s32.totalorder %s104, %s118
      %p120 = scmp.eq.s32.totalorder %s36, 0
      %p121 = por %p119, %p120
      %s123 = sadd.s32 %s122, 1
      %p126 = scmp.eq.s32.totalorder %s30, 2
      %p127 = scmp.ne.s32.totalorder %s122, %s124
      %p128 = scmp.eq.s32.totalorder %s30, 0
      %p129 = por %p127, %p128
      %p130 = scmp.ne.s32.totalorder %s122, %s124
      %p131 = scmp.eq.s32.totalorder %s35, 2
      %p132 = por %p130, %p131
      %p133 = scmp.ne.s32.totalorder %s124, %s125
      %p134 = scmp.eq.s32.totalorder %s35, 0
      %p135 = por %p133, %p134
      %p136 = scmp.ne.s32.totalorder %s124, %s125
      %p137 = scmp.eq.s32.totalorder %s36, 2
      %p138 = por %p136, %p137
      %p140 = scmp.ne.s32.totalorder %s125, %s139
      %p141 = scmp.eq.s32.totalorder %s36, 0
      %p142 = por %p140, %p141
      %s144 = sadd.s32 %s143, 1
      %p147 = scmp.eq.s32.totalorder %s30, 2
      %p148 = scmp.ne.s32.totalorder %s143, %s145
      %p149 = scmp.eq.s32.totalorder %s30, 0
      %p150 = por %p148, %p149
      %p151 = scmp.ne.s32.totalorder %s143, %s145
      %p152 = scmp.eq.s32.totalorder %s35, 2
      %p153 = por %p151, %p152
      %p154 = scmp.ne.s32.totalorder %s145, %s146
      %p155 = scmp.eq.s32.totalorder %s35, 0
      %p156 = por %p154, %p155
      %p157 = scmp.ne.s32.totalorder %s145, %s146
      %p158 = scmp.eq.s32.totalorder %s36, 2
      %p159 = por %p157, %p158
      %p161 = scmp.ne.s32.totalorder %s146, %s160
      %p162 = scmp.eq.s32.totalorder %s36, 0
      %p163 = por %p161, %p162
      %s165 = sadd.s32 %s164, 1
      %p168 = scmp.eq.s32.totalorder %s30, 2
      %p169 = scmp.ne.s32.totalorder %s164, %s166
      %p170 = scmp.eq.s32.totalorder %s30, 0
      %p171 = por %p169, %p170
      %p172 = scmp.ne.s32.totalorder %s164, %s166
      %p173 = scmp.eq.s32.totalorder %s35, 2
      %p174 = por %p172, %p173
      %p175 = scmp.ne.s32.totalorder %s166, %s167
      %p176 = scmp.eq.s32.totalorder %s35, 0
      %p177 = por %p175, %p176
      %p178 = scmp.ne.s32.totalorder %s166, %s167
      %p179 = scmp.eq.s32.totalorder %s36, 2
      %p180 = por %p178, %p179
      %p182 = scmp.ne.s32.totalorder %s167, %s181
      %p183 = scmp.eq.s32.totalorder %s36, 0
      %p184 = por %p182, %p183
      %s186 = sadd.s32 %s185, 1
      %p189 = scmp.eq.s32.totalorder %s30, 2
      %p190 = scmp.ne.s32.totalorder %s185, %s187
      %p191 = scmp.eq.s32.totalorder %s30, 0
      %p192 = por %p190, %p191
      %p193 = scmp.ne.s32.totalorder %s185, %s187
      %p194 = scmp.eq.s32.totalorder %s35, 2
      %p195 = por %p193, %p194
      %p196 = scmp.ne.s32.totalorder %s187, %s188
      %p197 = scmp.eq.s32.totalorder %s35, 0
      %p198 = por %p196, %p197
      %p199 = scmp.ne.s32.totalorder %s187, %s188
      %p200 = scmp.eq.s32.totalorder %s36, 2
      %p201 = por %p199, %p200
      %p203 = scmp.ne.s32.totalorder %s188, %s202
      %p204 = scmp.eq.s32.totalorder %s36, 0
      %p205 = por %p203, %p204
      %s206 = ssub.s32 %s30, %s37
      %p207 = scmp.eq.s32.totalorder %s206, 0
      %s209 = sadd.s32 %s208, 1
      %s210 = scalar_select %p207, %s208, %s209
      %p213 = pneg %p207
      %p214 = scmp.eq.s32.totalorder %s30, 2
      %p215 = por %p213, %p214
      %p216 = scmp.ne.s32.totalorder %s208, %s211
      %p217 = scmp.eq.s32.totalorder %s30, 0
      %p218 = por %p216, %p217
      %p219 = scmp.ne.s32.totalorder %s208, %s211
      %p220 = scmp.eq.s32.totalorder %s35, 2
      %p221 = por %p219, %p220
      %p222 = scmp.ne.s32.totalorder %s211, %s212
      %p223 = scmp.eq.s32.totalorder %s35, 0
      %p224 = por %p222, %p223
      %p225 = scmp.ne.s32.totalorder %s211, %s212
      %p226 = scmp.eq.s32.totalorder %s36, 2
      %p227 = por %p225, %p226
      %p229 = scmp.ne.s32.totalorder %s212, %s228
      %p230 = scmp.eq.s32.totalorder %s36, 0
      %p231 = por %p229, %p230
      %s232 = ssub.s32 %s30, %s37
      %p233 = scmp.eq.s32.totalorder %s232, 0
      %s235 = sadd.s32 %s234, 1
      %s236 = scalar_select %p233, %s234, %s235
      %p239 = pneg %p233
      %p240 = scmp.eq.s32.totalorder %s30, 2
      %p241 = por %p239, %p240
      %p242 = scmp.ne.s32.totalorder %s234, %s237
      %p243 = scmp.eq.s32.totalorder %s30, 0
      %p244 = por %p242, %p243
      %p245 = scmp.ne.s32.totalorder %s234, %s237
      %p246 = scmp.eq.s32.totalorder %s35, 2
      %p247 = por %p245, %p246
      %p248 = scmp.ne.s32.totalorder %s237, %s238
      %p249 = scmp.eq.s32.totalorder %s35, 0
      %p250 = por %p248, %p249
      %p251 = scmp.ne.s32.totalorder %s237, %s238
      %p252 = scmp.eq.s32.totalorder %s36, 2
      %p253 = por %p251, %p252
      %p255 = scmp.ne.s32.totalorder %s238, %s254
      %p256 = scmp.eq.s32.totalorder %s36, 0
      %p257 = por %p255, %p256
      %s258 = ssub.s32 %s30, %s37
      %p259 = scmp.eq.s32.totalorder %s258, 0
      %s261 = sadd.s32 %s260, 1
      %s262 = scalar_select %p259, %s260, %s261
      %p265 = pneg %p259
      %p266 = scmp.eq.s32.totalorder %s30, 2
      %p267 = por %p265, %p266
      %p268 = scmp.ne.s32.totalorder %s260, %s263
      %p269 = scmp.eq.s32.totalorder %s30, 0
      %p270 = por %p268, %p269
      %p271 = scmp.ne.s32.totalorder %s260, %s263
      %p272 = scmp.eq.s32.totalorder %s35, 2
      %p273 = por %p271, %p272
      %p274 = scmp.ne.s32.totalorder %s263, %s264
      %p275 = scmp.eq.s32.totalorder %s35, 0
      %p276 = por %p274, %p275
      %p277 = scmp.ne.s32.totalorder %s263, %s264
      %p278 = scmp.eq.s32.totalorder %s36, 2
      %p279 = por %p277, %p278
      %p281 = scmp.ne.s32.totalorder %s264, %s280
      %p282 = scmp.eq.s32.totalorder %s36, 0
      %p283 = por %p281, %p282
      %s284 = ssub.s32 %s30, %s37
      %p285 = scmp.eq.s32.totalorder %s284, 0
      %s287 = sadd.s32 %s286, 1
      %s288 = scalar_select %p285, %s286, %s287
      %p291 = pneg %p285
      %p292 = scmp.eq.s32.totalorder %s30, 2
      %p293 = por %p291, %p292
      %p294 = scmp.ne.s32.totalorder %s286, %s289
      %p295 = scmp.eq.s32.totalorder %s30, 0
      %p296 = por %p294, %p295
      %p297 = scmp.ne.s32.totalorder %s286, %s289
      %p298 = scmp.eq.s32.totalorder %s35, 2
      %p299 = por %p297, %p298
      %p300 = scmp.ne.s32.totalorder %s289, %s290
      %p301 = scmp.eq.s32.totalorder %s35, 0
      %p302 = por %p300, %p301
      %p303 = scmp.ne.s32.totalorder %s289, %s290
      %p304 = scmp.eq.s32.totalorder %s36, 2
      %p305 = por %p303, %p304
      %p307 = scmp.ne.s32.totalorder %s290, %s306
      %p308 = scmp.eq.s32.totalorder %s36, 0
      %p309 = por %p307, %p308
      %s310 = ssub.s32 %s30, %s37
      %p311 = scmp.eq.s32.totalorder %s310, 0
      %s313 = sadd.s32 %s312, 1
      %s314 = scalar_select %p311, %s312, %s313
      %p317 = pneg %p311
      %p318 = scmp.eq.s32.totalorder %s30, 2
      %p319 = por %p317, %p318
      %p320 = scmp.ne.s32.totalorder %s312, %s315
      %p321 = scmp.eq.s32.totalorder %s30, 0
      %p322 = por %p320, %p321
      %p323 = scmp.ne.s32.totalorder %s312, %s315
      %p324 = scmp.eq.s32.totalorder %s35, 2
      %p325 = por %p323, %p324
      %p326 = scmp.ne.s32.totalorder %s315, %s316
      %p327 = scmp.eq.s32.totalorder %s35, 0
      %p328 = por %p326, %p327
      %p329 = scmp.ne.s32.totalorder %s315, %s316
      %p330 = scmp.eq.s32.totalorder %s36, 2
      %p331 = por %p329, %p330
      %p333 = scmp.ne.s32.totalorder %s316, %s332
      %p334 = scmp.eq.s32.totalorder %s36, 0
      %p335 = por %p333, %p334
      %s336 = ssub.s32 %s30, %s37
      %p337 = scmp.eq.s32.totalorder %s336, 0
      %s339 = sadd.s32 %s338, 1
      %s340 = scalar_select %p337, %s338, %s339
      %p343 = pneg %p337
      %p344 = scmp.eq.s32.totalorder %s30, 2
      %p345 = por %p343, %p344
      %p346 = scmp.ne.s32.totalorder %s338, %s341
      %p347 = scmp.eq.s32.totalorder %s30, 0
      %p348 = por %p346, %p347
      %p349 = scmp.ne.s32.totalorder %s338, %s341
      %p350 = scmp.eq.s32.totalorder %s35, 2
      %p351 = por %p349, %p350
      %p352 = scmp.ne.s32.totalorder %s341, %s342
      %p353 = scmp.eq.s32.totalorder %s35, 0
      %p354 = por %p352, %p353
      %p355 = scmp.ne.s32.totalorder %s341, %s342
      %p356 = scmp.eq.s32.totalorder %s36, 2
      %p357 = por %p355, %p356
      %p359 = scmp.ne.s32.totalorder %s342, %s358
      %p360 = scmp.eq.s32.totalorder %s36, 0
      %p361 = por %p359, %p360
      %s363 = sadd.s32 %s362, 1
      %p366 = scmp.eq.s32.totalorder %s30, 2
      %p367 = scmp.ne.s32.totalorder %s362, %s364
      %p368 = scmp.eq.s32.totalorder %s30, 0
      %p369 = por %p367, %p368
      %p370 = scmp.ne.s32.totalorder %s362, %s364
      %p371 = scmp.eq.s32.totalorder %s35, 2
      %p372 = por %p370, %p371
      %p373 = scmp.ne.s32.totalorder %s364, %s365
      %p374 = scmp.eq.s32.totalorder %s35, 0
      %p375 = por %p373, %p374
      %p376 = scmp.ne.s32.totalorder %s364, %s365
      %p377 = scmp.eq.s32.totalorder %s36, 2
      %p378 = por %p376, %p377
      %p380 = scmp.ne.s32.totalorder %s365, %s379
      %p381 = scmp.eq.s32.totalorder %s36, 0
      %p382 = por %p380, %p381
      %s384 = sadd.s32 %s383, 1
      %p387 = scmp.eq.s32.totalorder %s30, 2
      %p388 = scmp.ne.s32.totalorder %s383, %s385
      %p389 = scmp.eq.s32.totalorder %s30, 0
      %p390 = por %p388, %p389
      %p391 = scmp.ne.s32.totalorder %s383, %s385
      %p392 = scmp.eq.s32.totalorder %s35, 2
      %p393 = por %p391, %p392
      %p394 = scmp.ne.s32.totalorder %s385, %s386
      %p395 = scmp.eq.s32.totalorder %s35, 0
      %p396 = por %p394, %p395
      %p397 = scmp.ne.s32.totalorder %s385, %s386
      %p398 = scmp.eq.s32.totalorder %s36, 2
      %p399 = por %p397, %p398
      %p401 = scmp.ne.s32.totalorder %s386, %s400
      %p402 = scmp.eq.s32.totalorder %s36, 0
      %p403 = por %p401, %p402
      %s405 = sadd.s32 %s404, 1
      %p408 = scmp.eq.s32.totalorder %s30, 2
      %p409 = scmp.ne.s32.totalorder %s404, %s406
      %p410 = scmp.eq.s32.totalorder %s30, 0
      %p411 = por %p409, %p410
      %p412 = scmp.ne.s32.totalorder %s404, %s406
      %p413 = scmp.eq.s32.totalorder %s35, 2
      %p414 = por %p412, %p413
      %p415 = scmp.ne.s32.totalorder %s406, %s407
      %p416 = scmp.eq.s32.totalorder %s35, 0
      %p417 = por %p415, %p416
      %p418 = scmp.ne.s32.totalorder %s406, %s407
      %p419 = scmp.eq.s32.totalorder %s36, 2
      %p420 = por %p418, %p419
      %p422 = scmp.ne.s32.totalorder %s407, %s421
      %p423 = scmp.eq.s32.totalorder %s36, 0
      %p424 = por %p422, %p423
      %p425 = scmp.le.s32.totalorder 1, %s30
      %p426 = scmp.lt.s32.totalorder %s30, 4
      %p427 = pnand %p425, %p426
      %p428 = pneg %p427
      // Predicated region
      $region9: #{tpu_custom_call.1} parent=5 // pred_check
        _
      $region10: #{tpu_custom_call.1} parent=5 // pred_check_branch
        %430 = sbr.rel (%p427) target = $region12
      $region11: #{tpu_custom_call.1} parent=5 // pred_region
        %s431 = ssub.s32 %s30, 1
        // Predicated region
        $region13: #{tpu_custom_call.1} parent=11 // pred_check
          %p432 = pneg %p51
        $region14: #{tpu_custom_call.1} parent=11 // pred_check_branch
          %434 = sbr.rel (%p432) target = $region16
        $region15: #{tpu_custom_call.1} parent=11 // pred_region
          _
        $region16: #{tpu_custom_call.1} parent=11 // pred_fallthru
          _
        // Predicated region
        $region17: #{tpu_custom_call.1} parent=11 // pred_check
          %p435 = pneg %p72
        $region18: #{tpu_custom_call.1} parent=11 // pred_check_branch
          %437 = sbr.rel (%p435) target = $region20
        $region19: #{tpu_custom_call.1} parent=11 // pred_region
          _
        $region20: #{tpu_custom_call.1} parent=11 // pred_fallthru
          _
        // Predicated region
        $region21: #{tpu_custom_call.1} parent=11 // pred_check
          %p438 = pneg %p93
        $region22: #{tpu_custom_call.1} parent=11 // pred_check_branch
          %440 = sbr.rel (%p438) target = $region24
        $region23: #{tpu_custom_call.1} parent=11 // pred_region
          _
        $region24: #{tpu_custom_call.1} parent=11 // pred_fallthru
          _
        // Predicated region
        $region25: #{tpu_custom_call.1} parent=11 // pred_check
          %p441 = pneg %p114
        $region26: #{tpu_custom_call.1} parent=11 // pred_check_branch
          %443 = sbr.rel (%p441) target = $region28
        $region27: #{tpu_custom_call.1} parent=11 // pred_region
          _
        $region28: #{tpu_custom_call.1} parent=11 // pred_fallthru
          _
        // Predicated region
        $region29: #{tpu_custom_call.1} parent=11 // pred_check
          %p444 = pneg %p135
        $region30: #{tpu_custom_call.1} parent=11 // pred_check_branch
          %446 = sbr.rel (%p444) target = $region32
        $region31: #{tpu_custom_call.1} parent=11 // pred_region
          _
        $region32: #{tpu_custom_call.1} parent=11 // pred_fallthru
          _
        // Predicated region
        $region33: #{tpu_custom_call.1} parent=11 // pred_check
          %p447 = pneg %p156
        $region34: #{tpu_custom_call.1} parent=11 // pred_check_branch
          %449 = sbr.rel (%p447) target = $region36
        $region35: #{tpu_custom_call.1} parent=11 // pred_region
          %s451 = ssub.s32 2048, 2048
          %452 = vsyncadd [#allocation3], %s451
          %s453 = sshll.u32 [#allocation2], 4
          %s454 = int_to_ptr.vmem [resolvable:$true] %s453
          %459 = dma.hbm_to_vmem [thread:$0]  %s5, 2048, %s454, [#allocation3], 128, 128, 8
        $region36: #{tpu_custom_call.1} parent=11 // pred_fallthru
          _
        // Predicated region
        $region37: #{tpu_custom_call.1} parent=11 // pred_check
          %p460 = pneg %p177
        $region38: #{tpu_custom_call.1} parent=11 // pred_check_branch
          %462 = sbr.rel (%p460) target = $region40
        $region39: #{tpu_custom_call.1} parent=11 // pred_region
          _
        $region40: #{tpu_custom_call.1} parent=11 // pred_fallthru
          _
        // Predicated region
        $region41: #{tpu_custom_call.1} parent=11 // pred_check
          %p463 = pneg %p198
        $region42: #{tpu_custom_call.1} parent=11 // pred_check_branch
          %465 = sbr.rel (%p463) target = $region44
        $region43: #{tpu_custom_call.1} parent=11 // pred_region
          %s467 = ssub.s32 64, 64
          %468 = vsyncadd [#allocation5], %s467
          %s470 = sshll.u32 %s7, 4
          %s471 = int_to_ptr.vmem [resolvable:$true] %s470
          %473 = dma.vmem_to_smem %s471, 64, [#allocation6], [#allocation5]
        $region44: #{tpu_custom_call.1} parent=11 // pred_fallthru
          _
      $region12: #{tpu_custom_call.1} parent=5 // pred_fallthru
        _
      %p474 = scmp.lt.s32.totalorder %s30, 3
      // Predicated region
      $region45: #{tpu_custom_call.1} parent=5 // pred_check
        %p475 = pneg %p474
      $region46: #{tpu_custom_call.1} parent=5 // pred_check_branch
        %477 = sbr.rel (%p475) target = $region48
      $region47: #{tpu_custom_call.1} parent=5 // pred_region
        // Predicated region
        $region49: #{tpu_custom_call.1} parent=47 // pred_check
          %p478 = pneg %p218
        $region50: #{tpu_custom_call.1} parent=47 // pred_check_branch
          %480 = sbr.rel (%p478) target = $region52
        $region51: #{tpu_custom_call.1} parent=47 // pred_region
          %p481 = scmp.lt.s32.totalorder %s30, 2
          %s482 = scalar_select %p481, %s30, 2
          %s483 = smul.addr %s482, 8
          %s484 = scalar_lea.vmem %s8, %s483
        $region52: #{tpu_custom_call.1} parent=47 // pred_fallthru
          _
        // Predicated region
        $region53: #{tpu_custom_call.1} parent=47 // pred_check
          %p485 = pneg %p244
        $region54: #{tpu_custom_call.1} parent=47 // pred_check_branch
          %487 = sbr.rel (%p485) target = $region56
        $region55: #{tpu_custom_call.1} parent=47 // pred_region
          %p488 = scmp.lt.s32.totalorder %s30, 2
          %s489 = scalar_select %p488, %s30, 2
          %s490 = scalar_lea.vmem %s9, %s489
        $region56: #{tpu_custom_call.1} parent=47 // pred_fallthru
          _
        // Predicated region
        $region57: #{tpu_custom_call.1} parent=47 // pred_check
          %p491 = pneg %p270
        $region58: #{tpu_custom_call.1} parent=47 // pred_check_branch
          %493 = sbr.rel (%p491) target = $region60
        $region59: #{tpu_custom_call.1} parent=47 // pred_region
          %s494 = sand.u32 %s30, 1
          %s495 = scalar_lea.sflag [#allocation8], %s494
          %s496 = sand.u32 %s260, 1
          %s497 = smul.addr %s496, 128
          %s498 = scalar_lea.vmem [#allocation7], %s497
          %s500 = ssub.s32 2048, 2048
          %501 = vsyncadd %s495, %s500
          %s502 = smul.addr %s30, 16
          %s503 = smul.addr %s502, 128
          %s504 = scalar_lea.hbm %s10, %s503
          %s505 = sshll.u32 %s498, 4
          %s506 = int_to_ptr.vmem [resolvable:$true] %s505
          %511 = dma.hbm_to_vmem [thread:$0]  %s504, 2048, %s506, %s495, 128, 128, 8
        $region60: #{tpu_custom_call.1} parent=47 // pred_fallthru
          _
        // Predicated region
        $region61: #{tpu_custom_call.1} parent=47 // pred_check
          %p512 = pneg %p296
        $region62: #{tpu_custom_call.1} parent=47 // pred_check_branch
          %514 = sbr.rel (%p512) target = $region64
        $region63: #{tpu_custom_call.1} parent=47 // pred_region
          %p515 = scmp.lt.s32.totalorder %s30, 2
          %s516 = scalar_select %p515, %s30, 2
          %s517 = scalar_lea.vmem %s11, %s516
        $region64: #{tpu_custom_call.1} parent=47 // pred_fallthru
          _
        // Predicated region
        $region65: #{tpu_custom_call.1} parent=47 // pred_check
          %p518 = pneg %p322
        $region66: #{tpu_custom_call.1} parent=47 // pred_check_branch
          %520 = sbr.rel (%p518) target = $region68
        $region67: #{tpu_custom_call.1} parent=47 // pred_region
          %s521 = sand.u32 %s30, 1
          %s522 = scalar_lea.sflag [#allocation8], %s521
          %s523 = sand.u32 %s312, 1
          %s524 = smul.addr %s523, 128
          %s525 = scalar_lea.vmem [#allocation9], %s524
          %s527 = ssub.s32 2048, 2048
          %528 = vsyncadd %s522, %s527
          %s529 = smul.addr %s30, 16
          %s530 = smul.addr %s529, 128
          %s531 = scalar_lea.hbm %s12, %s530
          %s532 = sshll.u32 %s525, 4
          %s533 = int_to_ptr.vmem [resolvable:$true] %s532
          %538 = dma.hbm_to_vmem [thread:$0]  %s531, 2048, %s533, %s522, 128, 128, 8
        $region68: #{tpu_custom_call.1} parent=47 // pred_fallthru
          _
        // Predicated region
        $region69: #{tpu_custom_call.1} parent=47 // pred_check
          %p539 = pneg %p348
        $region70: #{tpu_custom_call.1} parent=47 // pred_check_branch
          %541 = sbr.rel (%p539) target = $region72
        $region71: #{tpu_custom_call.1} parent=47 // pred_region
          %p542 = scmp.lt.s32.totalorder %s30, 2
          %s543 = scalar_select %p542, %s30, 2
          %s544 = scalar_lea.vmem %s13, %s543
        $region72: #{tpu_custom_call.1} parent=47 // pred_fallthru
          _
      $region48: #{tpu_custom_call.1} parent=5 // pred_fallthru
        _
      %p545 = scmp.le.s32.totalorder 1, %s30
      %p546 = scmp.lt.s32.totalorder %s30, 4
      %p547 = pnand %p545, %p546
      %p548 = pneg %p547
      // Predicated region
      $region73: #{tpu_custom_call.1} parent=5 // pred_check
        _
      $region74: #{tpu_custom_call.1} parent=5 // pred_check_branch
        %550 = sbr.rel (%p547) target = $region76
      $region75: #{tpu_custom_call.1} parent=5 // pred_region
        %s551 = ssub.s32 %s30, 1
        // Predicated region
        $region77: #{tpu_custom_call.1} parent=75 // pred_check
          %p552 = pneg %p156
        $region78: #{tpu_custom_call.1} parent=75 // pred_check_branch
          %554 = sbr.rel (%p552) target = $region80
        $region79: #{tpu_custom_call.1} parent=75 // pred_region
          %555 = dma.done [#allocation3], 2048
        $region80: #{tpu_custom_call.1} parent=75 // pred_fallthru
          _
        // Predicated region
        $region81: #{tpu_custom_call.1} parent=75 // pred_check
          %p556 = pneg %p198
        $region82: #{tpu_custom_call.1} parent=75 // pred_check_branch
          %558 = sbr.rel (%p556) target = $region84
        $region83: #{tpu_custom_call.1} parent=75 // pred_region
          %559 = dma.done [#allocation5], 64
        $region84: #{tpu_custom_call.1} parent=75 // pred_fallthru
          _
        %s560 = sand.u32 %s35, 1
        %s561 = scalar_lea.sflag [#allocation8], %s560
        %s562 = sand.u32 %s263, 1
        %s563 = smul.addr %s562, 128
        %s564 = scalar_lea.vmem [#allocation7], %s563
        // Predicated region
        $region85: #{tpu_custom_call.1} parent=75 // pred_check
          %p565 = pneg %p276
        $region86: #{tpu_custom_call.1} parent=75 // pred_check_branch
          %567 = sbr.rel (%p565) target = $region88
        $region87: #{tpu_custom_call.1} parent=75 // pred_region
          %568 = dma.done %s561, 2048
        $region88: #{tpu_custom_call.1} parent=75 // pred_fallthru
          _
        %s569 = sand.u32 %s35, 1
        %s570 = scalar_lea.sflag [#allocation8], %s569
        %s571 = sand.u32 %s315, 1
        %s572 = smul.addr %s571, 128
        %s573 = scalar_lea.vmem [#allocation9], %s572
        // Predicated region
        $region89: #{tpu_custom_call.1} parent=75 // pred_check
          %p574 = pneg %p328
        $region90: #{tpu_custom_call.1} parent=75 // pred_check_branch
          %576 = sbr.rel (%p574) target = $region92
        $region91: #{tpu_custom_call.1} parent=75 // pred_region
          %577 = dma.done %s570, 2048
        $region92: #{tpu_custom_call.1} parent=75 // pred_fallthru
          _
        %578 = sfence
        %p579 = pneg %p51
        %p580 = pneg %p48
        %p581 = pneg %p72
        %p582 = pneg %p69
        %p583 = pneg %p93
        %p584 = pneg %p90
        %p585 = pneg %p114
        %p586 = pneg %p111
        %p587 = pneg %p135
        %p588 = pneg %p132
        %p589 = pneg %p156
        %p590 = pneg %p153
        %p591 = pneg %p177
        %p592 = pneg %p174
        %p593 = pneg %p198
        %p594 = pneg %p195
        %p595 = scmp.lt.s32.totalorder %s35, 2
        %s596 = scalar_select %p595, %s35, 2
        %s597 = smul.addr %s596, 8
        %s598 = scalar_lea.vmem %s8, %s597
        %p599 = pneg %p224
        %p600 = pneg %p221
        %p601 = scmp.lt.s32.totalorder %s35, 2
        %s602 = scalar_select %p601, %s35, 2
        %s603 = scalar_lea.vmem %s9, %s602
        %p604 = pneg %p250
        %p605 = pneg %p247
        %s606 = sand.u32 %s35, 1
        %s607 = scalar_lea.sflag [#allocation8], %s606
        %s608 = sand.u32 %s263, 1
        %s609 = smul.addr %s608, 128
        %s610 = scalar_lea.vmem [#allocation7], %s609
        %p611 = pneg %p276
        %p612 = pneg %p273
        %p613 = scmp.lt.s32.totalorder %s35, 2
        %s614 = scalar_select %p613, %s35, 2
        %s615 = scalar_lea.vmem %s11, %s614
        %p616 = pneg %p302
        %p617 = pneg %p299
        %s618 = sand.u32 %s35, 1
        %s619 = scalar_lea.sflag [#allocation8], %s618
        %s620 = sand.u32 %s315, 1
        %s621 = smul.addr %s620, 128
        %s622 = scalar_lea.vmem [#allocation9], %s621
        %p623 = pneg %p328
        %p624 = pneg %p325
        %p625 = scmp.lt.s32.totalorder %s35, 2
        %s626 = scalar_select %p625, %s35, 2
        %s627 = scalar_lea.vmem %s13, %s626
        %p628 = pneg %p354
        %p629 = pneg %p351
        %p630 = pneg %p375
        %p631 = pneg %p372
        %p632 = pneg %p396
        %p633 = pneg %p393
        %p634 = pneg %p417
        %p635 = pneg %p414
        %p636 = scmp.lt.s32.totalorder %s35, 2
        %s637 = scalar_select %p636, %s35, 2
        %s638 = smul.addr %s637, 8
        %s639 = scalar_lea.vmem %s8, %s638
        %p640 = scmp.lt.s32.totalorder %s35, 2
        %s641 = scalar_select %p640, %s35, 2
        %s642 = scalar_lea.vmem %s9, %s641
        %p643 = scmp.lt.s32.totalorder %s35, 2
        %s644 = scalar_select %p643, %s35, 2
        %s645 = scalar_lea.vmem %s11, %s644
        %p646 = scmp.lt.s32.totalorder %s35, 2
        %s647 = scalar_select %p646, %s35, 2
        %s648 = scalar_lea.vmem %s13, %s647
        %p650 = scmp.eq.s32.totalorder %s35, 0
        // Predicated region
        $region93: #{tpu_custom_call.1} parent=75 // pred_check
          %p651 = pneg %p650
        $region94: #{tpu_custom_call.1} parent=75 // pred_check_branch
          %653 = sbr.rel (%p651) target = $region96
        $region95: #{tpu_custom_call.1} parent=75 // pred_region
          %v654 = vld [vmem:[%s0] sm:$0xff]
          %v655 = vld [vmem:[%s0 + $0x8] sm:$0xff]
          %656 = vst [vmem:[#allocation10] sm:$0xff] %v654
          %657 = vst [vmem:[#allocation10 + $0x8] sm:$0xff] %v655
        $region96: #{tpu_custom_call.1} parent=75 // pred_fallthru
          _
        %v658 = vld [vmem:[#allocation10] sm:$0xff]
        %v659 = vld [vmem:[#allocation10 + $0x8] sm:$0xff]
        %v660 = vld [vmem:[%s3] sm:$0xff]
        %v661 = vld [vmem:[%s3 + $0x8] sm:$0xff]
        %v662 = vld [vmem:[%s3 + $0x10] sm:$0xff]
        %v663 = vld [vmem:[%s3 + $0x18] sm:$0xff]
        %v664 = vld [vmem:[%s639] sm:$0xff]
        %v665 = vld [vmem:[%s642] sm:$0x1]
        %v667 = vlaneseq
        %v668 = vshrl.u32 %v667, 7
        %v669 = vsub.s32 0, %v668
        %v670 = vrot.slane %v665, %v669
        %vm672 = vcmask 64512
        %v674 = vsel %vm672, %v660, 0
        %v677 = vsel %vm672, %v661, 0
        %v680 = vsel %vm672, %v662, 0
        %v683 = vsel %vm672, %v663, 0
        %685 = vmatprep.subr.mxu0 0.0
        %686 = vmatpush1.msra.mxu0 0.0
        %687 = vmatprep.subr.mxu0 0.0
        %688 = vmatpush1.msra.mxu0 0.0
        %689 = vmatprep.subr.mxu0 0.0
        %690 = vmatpush1.msra.mxu0 0.0
        %691 = vmatprep.subr.mxu0 0.0
        %692 = vmatpush1.msra.mxu0 0.0
        %693 = vmatprep.subr.mxu0 0.0
        %694 = vmatpush1.msra.mxu0 0.0
        %695 = vmatprep.subr.mxu0 0.0
        %696 = vmatpush1.msra.mxu0 0.0
        %697 = vmatprep.subr.mxu0 0.0
        %698 = vmatpush1.msra.mxu0 0.0
        %699 = vmatprep.subr.mxu0 0.0
        %700 = vmatpush1.msra.mxu0 0.0
        %701 = vmatprep.subr.mxu0 0.0
        %702 = vmatpush1.msra.mxu0 0.0
        %703 = vmatprep.subr.mxu0 0.0
        %704 = vmatpush1.msra.mxu0 0.0
        %705 = vmatprep.subr.mxu0 0.0
        %706 = vmatpush1.msra.mxu0 0.0
        %707 = vmatprep.subr.mxu0 0.0
        %708 = vmatpush1.msra.mxu0 0.0
        %709 = vmatprep.subr.mxu0 0.0
        %710 = vmatpush1.msra.mxu0 0.0
        %711 = vmatprep.subr.mxu0 0.0
        %712 = vmatpush1.msra.mxu0 0.0
        %713 = vmatprep.subr.mxu0 0.0
        %714 = vmatpush1.msra.mxu0 0.0
        %715 = vmatprep.subr.mxu0 0.0
        %716 = vmatpush1.msra.mxu0 %v664
        %717 = vmatprep.subr.mxu0 0.0
        %718 = vmatpush2.msra.mxu0 0.0
        %719 = vmatprep.subr.mxu0 0.0
        %720 = vmatpush2.msra.mxu0 0.0
        %721 = vmatprep.subr.mxu0 0.0
        %722 = vmatpush2.msra.mxu0 0.0
        %723 = vmatprep.subr.mxu0 0.0
        %724 = vmatpush2.msra.mxu0 0.0
        %725 = vmatprep.subr.mxu0 0.0
        %726 = vmatpush2.msra.mxu0 0.0
        %727 = vmatprep.subr.mxu0 0.0
        %728 = vmatpush2.msra.mxu0 0.0
        %729 = vmatprep.subr.mxu0 0.0
        %730 = vmatpush2.msra.mxu0 0.0
        %731 = vmatprep.subr.mxu0 0.0
        %732 = vmatpush2.msra.mxu0 0.0
        %733 = vmatprep.subr.mxu0 0.0
        %734 = vmatpush2.msra.mxu0 0.0
        %735 = vmatprep.subr.mxu0 0.0
        %736 = vmatpush2.msra.mxu0 0.0
        %737 = vmatprep.subr.mxu0 0.0
        %738 = vmatpush2.msra.mxu0 0.0
        %739 = vmatprep.subr.mxu0 0.0
        %740 = vmatpush2.msra.mxu0 0.0
        %741 = vmatprep.subr.mxu0 0.0
        %742 = vmatpush2.msra.mxu0 0.0
        %743 = vmatprep.subr.mxu0 0.0
        %744 = vmatpush2.msra.mxu0 0.0
        %745 = vmatprep.subr.mxu0 0.0
        %746 = vmatpush2.msra.mxu0 0.0
        %747 = vmatprep.subr.mxu0 0.0
        %748 = vmatpush2.msra.mxu0 0.0
        %749 = vmatprep.mubr.f32.mxu0 0.0
        %750 = vmatmul.mubr.f32.gmra.mxu0 %v674
        %v751 = vpop.f32.mrf.mxu0
        %v752 = vadd.f32 %v670, %v751
        %v753 = vpop.f32.mrf.mxu0
        %754 = vmatprep.mubr.f32.mxu0 0.0
        %755 = vmatmul.mubr.f32.gmra.mxu0 %v677
        %v756 = vpop.f32.mrf.mxu0
        %v757 = vadd.f32 %v670, %v756
        %v758 = vpop.f32.mrf.mxu0
        %759 = vmatprep.mubr.f32.mxu0 0.0
        %760 = vmatmul.mubr.f32.gmra.mxu0 %v680
        %v761 = vpop.f32.mrf.mxu0
        %v762 = vadd.f32 %v670, %v761
        %v763 = vpop.f32.mrf.mxu0
        %764 = vmatprep.mubr.f32.mxu0 0.0
        %765 = vmatmul.mubr.f32.gmra.mxu0 %v683
        %v766 = vpop.f32.mrf.mxu0
        %v767 = vadd.f32 %v670, %v766
        %v768 = vpop.f32.mrf.mxu0
        %769 = vdwg.mxu0
        %v770 = vld [vmem:[%s1] sm:$0xf]
        %v771 = vld [vmem:[%s1 + $0x4] sm:$0xf]
        %v772 = vld [vmem:[%s1 + $0x8] sm:$0xf]
        %v773 = vld [vmem:[%s1 + $0xc] sm:$0xf]
        %v774 = vpack.c.bf16 %v659, %v658
        %v779 = vunpack.c.l.b16 %v770
        %v780 = vunpack.c.l.b16 %v771
        %v781 = vunpack.c.l.b16 %v772
        %v782 = vunpack.c.l.b16 %v773
        %v783 = vpack.c.b16 %v780, %v779
        %v784 = vpack.c.b16 %v782, %v781
        %vm785 = vcmask 130048
        %v787 = vsel %vm785, %v783, 0
        %v790 = vsel %vm785, %v784, 0
        %792 = vmatprep.subr.bf16.mxu0 0
        %793 = vmatpush1.bf16.msra.mxu0 0
        %794 = vmatprep.subr.bf16.mxu0 0
        %795 = vmatpush1.bf16.msra.mxu0 0
        %796 = vmatprep.subr.bf16.mxu0 0
        %797 = vmatpush1.bf16.msra.mxu0 0
        %798 = vmatprep.subr.bf16.mxu0 0
        %799 = vmatpush1.bf16.msra.mxu0 0
        %800 = vmatprep.subr.bf16.mxu0 0
        %801 = vmatpush1.bf16.msra.mxu0 0
        %802 = vmatprep.subr.bf16.mxu0 0
        %803 = vmatpush1.bf16.msra.mxu0 0
        %804 = vmatprep.subr.bf16.mxu0 0
        %805 = vmatpush1.bf16.msra.mxu0 0
        %806 = vmatprep.subr.bf16.mxu0 0
        %807 = vmatpush1.bf16.msra.mxu0 %v774
        %808 = vmatprep.subr.bf16.mxu0 0
        %809 = vmatpush2.bf16.msra.mxu0 0
        %810 = vmatprep.subr.bf16.mxu0 0
        %811 = vmatpush2.bf16.msra.mxu0 0
        %812 = vmatprep.subr.bf16.mxu0 0
        %813 = vmatpush2.bf16.msra.mxu0 0
        %814 = vmatprep.subr.bf16.mxu0 0
        %815 = vmatpush2.bf16.msra.mxu0 0
        %816 = vmatprep.subr.bf16.mxu0 0
        %817 = vmatpush2.bf16.msra.mxu0 0
        %818 = vmatprep.subr.bf16.mxu0 0
        %819 = vmatpush2.bf16.msra.mxu0 0
        %820 = vmatprep.subr.bf16.mxu0 0
        %821 = vmatpush2.bf16.msra.mxu0 0
        %822 = vmatprep.subr.bf16.mxu0 0
        %823 = vmatpush2.bf16.msra.mxu0 0
        %824 = vmatprep.mubr.bf16.mxu0 0
        %825 = vmatmul.mubr.bf16.gmra.mxu0 %v787
        %v826 = vpop.f32.mrf.mxu0
        %v827 = vadd.f32 %v752, %v826
        %v828 = vpop.f32.mrf.mxu0
        %v829 = vpop.f32.mrf.mxu0
        %v830 = vadd.f32 %v757, %v829
        %v831 = vpop.f32.mrf.mxu0
        %832 = vmatprep.mubr.bf16.mxu0 0
        %833 = vmatmul.mubr.bf16.gmra.mxu0 %v790
        %v834 = vpop.f32.mrf.mxu0
        %v835 = vadd.f32 %v762, %v834
        %v836 = vpop.f32.mrf.mxu0
        %v837 = vpop.f32.mrf.mxu0
        %v838 = vadd.f32 %v767, %v837
        %v839 = vpop.f32.mrf.mxu0
        %840 = vdwg.mxu0
        %v841 = vmax.f32 %v827, 0.0
        %v842 = vmax.f32 %v830, 0.0
        %v843 = vmax.f32 %v835, 0.0
        %v844 = vmax.f32 %v838, 0.0
        %v845 = vld [vmem:[%s2] sm:$0xf]
        %v846 = vld [vmem:[%s2 + $0x4] sm:$0xf]
        %v847 = vpack.c.bf16 %v842, %v841
        %v848 = vpack.c.bf16 %v844, %v843
        %v851 = vunpack.c.l.b16 %v845
        %v852 = vunpack.c.l.b16 %v846
        %v853 = vpack.c.b16 %v852, %v851
        %vm854 = vcmask 261120
        %v856 = vsel %vm854, %v853, 0
        %858 = vmatprep.subr.bf16.mxu0 0
        %859 = vmatpush1.bf16.msra.mxu0 0
        %860 = vmatprep.subr.bf16.mxu0 0
        %861 = vmatpush1.bf16.msra.mxu0 0
        %862 = vmatprep.subr.bf16.mxu0 0
        %863 = vmatpush1.bf16.msra.mxu0 0
        %864 = vmatprep.subr.bf16.mxu0 0
        %865 = vmatpush1.bf16.msra.mxu0 0
        %866 = vmatprep.subr.bf16.mxu0 0
        %867 = vmatpush1.bf16.msra.mxu0 0
        %868 = vmatprep.subr.bf16.mxu0 0
        %869 = vmatpush1.bf16.msra.mxu0 0
        %870 = vmatprep.subr.bf16.mxu0 0
        %871 = vmatpush1.bf16.msra.mxu0 %v848
        %872 = vmatprep.subr.bf16.mxu0 0
        %873 = vmatpush1.bf16.msra.mxu0 %v847
        %874 = vmatprep.subr.bf16.mxu0 0
        %875 = vmatpush2.bf16.msra.mxu0 0
        %876 = vmatprep.subr.bf16.mxu0 0
        %877 = vmatpush2.bf16.msra.mxu0 0
        %878 = vmatprep.subr.bf16.mxu0 0
        %879 = vmatpush2.bf16.msra.mxu0 0
        %880 = vmatprep.subr.bf16.mxu0 0
        %881 = vmatpush2.bf16.msra.mxu0 0
        %882 = vmatprep.subr.bf16.mxu0 0
        %883 = vmatpush2.bf16.msra.mxu0 0
        %884 = vmatprep.subr.bf16.mxu0 0
        %885 = vmatpush2.bf16.msra.mxu0 0
        %886 = vmatprep.subr.bf16.mxu0 0
        %887 = vmatpush2.bf16.msra.mxu0 0
        %888 = vmatprep.subr.bf16.mxu0 0
        %889 = vmatpush2.bf16.msra.mxu0 0
        %890 = vmatprep.mubr.bf16.mxu0 0
        %891 = vmatmul.mubr.bf16.gmra.mxu0 %v856
        %v892 = vpop.f32.mrf.mxu0
        %v893 = vadd.f32 0.0, %v892
        %v894 = vpop.f32.mrf.mxu0
        %v895 = vpop.f32.mrf.mxu0
        %v896 = vadd.f32 0.0, %v895
        %v897 = vpop.f32.mrf.mxu0
        %898 = vdwg.mxu0
        %s899 = smul.u32 %s35, 128
        %s900 = sld [smem:[#allocation6 + %s899]]
        %s901 = sadd.f32 %s900, 1.0
        %v902 = vstv %s901
        %v903 = vmul.f32 %v902, %v658
        %v904 = vmul.f32 %v902, %v659
        %v905 = vadd.f32 %v903, %v893
        %v906 = vadd.f32 %v904, %v896
        %v907 = vld [vmem:[%s564] sm:$0xff]
        %v908 = vld [vmem:[%s564 + $0x8] sm:$0xff]
        %v909 = vld [vmem:[%s564 + $0x10] sm:$0xff]
        %v910 = vld [vmem:[%s564 + $0x18] sm:$0xff]
        %v911 = vld [vmem:[%s564 + $0x20] sm:$0xff]
        %v912 = vld [vmem:[%s564 + $0x28] sm:$0xff]
        %v913 = vld [vmem:[%s564 + $0x30] sm:$0xff]
        %v914 = vld [vmem:[%s564 + $0x38] sm:$0xff]
        %v915 = vld [vmem:[%s564 + $0x40] sm:$0xff]
        %v916 = vld [vmem:[%s564 + $0x48] sm:$0xff]
        %v917 = vld [vmem:[%s564 + $0x50] sm:$0xff]
        %v918 = vld [vmem:[%s564 + $0x58] sm:$0xff]
        %v919 = vld [vmem:[%s564 + $0x60] sm:$0xff]
        %v920 = vld [vmem:[%s564 + $0x68] sm:$0xff]
        %v921 = vld [vmem:[%s564 + $0x70] sm:$0xff]
        %v922 = vld [vmem:[%s564 + $0x78] sm:$0xff]
        %v923 = vld [vmem:[%s645] sm:$0x1]
        %v925 = vlaneseq
        %v926 = vshrl.u32 %v925, 7
        %v927 = vsub.s32 0, %v926
        %v928 = vrot.slane %v923, %v927
        %930 = vmatprep.subr.mxu0 0.0
        %931 = vmatpush1.msra.mxu0 %v922
        %932 = vmatprep.subr.mxu0 0.0
        %933 = vmatpush1.msra.mxu0 %v921
        %934 = vmatprep.subr.mxu0 0.0
        %935 = vmatpush1.msra.mxu0 %v920
        %936 = vmatprep.subr.mxu0 0.0
        %937 = vmatpush1.msra.mxu0 %v919
        %938 = vmatprep.subr.mxu0 0.0
        %939 = vmatpush1.msra.mxu0 %v918
        %940 = vmatprep.subr.mxu0 0.0
        %941 = vmatpush1.msra.mxu0 %v917
        %942 = vmatprep.subr.mxu0 0.0
        %943 = vmatpush1.msra.mxu0 %v916
        %944 = vmatprep.subr.mxu0 0.0
        %945 = vmatpush1.msra.mxu0 %v915
        %946 = vmatprep.subr.mxu0 0.0
        %947 = vmatpush1.msra.mxu0 %v914
        %948 = vmatprep.subr.mxu0 0.0
        %949 = vmatpush1.msra.mxu0 %v913
        %950 = vmatprep.subr.mxu0 0.0
        %951 = vmatpush1.msra.mxu0 %v912
        %952 = vmatprep.subr.mxu0 0.0
        %953 = vmatpush1.msra.mxu0 %v911
        %954 = vmatprep.subr.mxu0 0.0
        %955 = vmatpush1.msra.mxu0 %v910
        %956 = vmatprep.subr.mxu0 0.0
        %957 = vmatpush1.msra.mxu0 %v909
        %958 = vmatprep.subr.mxu0 0.0
        %959 = vmatpush1.msra.mxu0 %v908
        %960 = vmatprep.subr.mxu0 0.0
        %961 = vmatpush1.msra.mxu0 %v907
        %962 = vmatprep.subr.mxu0 0.0
        %963 = vmatpush2.msra.mxu0 0.0
        %964 = vmatprep.subr.mxu0 0.0
        %965 = vmatpush2.msra.mxu0 0.0
        %966 = vmatprep.subr.mxu0 0.0
        %967 = vmatpush2.msra.mxu0 0.0
        %968 = vmatprep.subr.mxu0 0.0
        %969 = vmatpush2.msra.mxu0 0.0
        %970 = vmatprep.subr.mxu0 0.0
        %971 = vmatpush2.msra.mxu0 0.0
        %972 = vmatprep.subr.mxu0 0.0
        %973 = vmatpush2.msra.mxu0 0.0
        %974 = vmatprep.subr.mxu0 0.0
        %975 = vmatpush2.msra.mxu0 0.0
        %976 = vmatprep.subr.mxu0 0.0
        %977 = vmatpush2.msra.mxu0 0.0
        %978 = vmatprep.subr.mxu0 0.0
        %979 = vmatpush2.msra.mxu0 0.0
        %980 = vmatprep.subr.mxu0 0.0
        %981 = vmatpush2.msra.mxu0 0.0
        %982 = vmatprep.subr.mxu0 0.0
        %983 = vmatpush2.msra.mxu0 0.0
        %984 = vmatprep.subr.mxu0 0.0
        %985 = vmatpush2.msra.mxu0 0.0
        %986 = vmatprep.subr.mxu0 0.0
        %987 = vmatpush2.msra.mxu0 0.0
        %988 = vmatprep.subr.mxu0 0.0
        %989 = vmatpush2.msra.mxu0 0.0
        %990 = vmatprep.subr.mxu0 0.0
        %991 = vmatpush2.msra.mxu0 0.0
        %992 = vmatprep.subr.mxu0 0.0
        %993 = vmatpush2.msra.mxu0 0.0
        %994 = vmatprep.mubr.f32.mxu0 0.0
        %995 = vmatmul.mubr.f32.gmra.mxu0 %v905
        %v996 = vpop.f32.mrf.mxu0
        %v997 = vadd.f32 %v928, %v996
        %v998 = vpop.f32.mrf.mxu0
        %999 = vmatprep.mubr.f32.mxu0 0.0
        %1000 = vmatmul.mubr.f32.gmra.mxu0 %v906
        %v1001 = vpop.f32.mrf.mxu0
        %v1002 = vadd.f32 %v928, %v1001
        %v1003 = vpop.f32.mrf.mxu0
        %1004 = vdwg.mxu0
        %v1005 = vmax.f32 %v997, 0.0
        %v1006 = vmax.f32 %v1002, 0.0
        %v1007 = vld [vmem:[%s573] sm:$0xff]
        %v1008 = vld [vmem:[%s573 + $0x8] sm:$0xff]
        %v1009 = vld [vmem:[%s573 + $0x10] sm:$0xff]
        %v1010 = vld [vmem:[%s573 + $0x18] sm:$0xff]
        %v1011 = vld [vmem:[%s573 + $0x20] sm:$0xff]
        %v1012 = vld [vmem:[%s573 + $0x28] sm:$0xff]
        %v1013 = vld [vmem:[%s573 + $0x30] sm:$0xff]
        %v1014 = vld [vmem:[%s573 + $0x38] sm:$0xff]
        %v1015 = vld [vmem:[%s573 + $0x40] sm:$0xff]
        %v1016 = vld [vmem:[%s573 + $0x48] sm:$0xff]
        %v1017 = vld [vmem:[%s573 + $0x50] sm:$0xff]
        %v1018 = vld [vmem:[%s573 + $0x58] sm:$0xff]
        %v1019 = vld [vmem:[%s573 + $0x60] sm:$0xff]
        %v1020 = vld [vmem:[%s573 + $0x68] sm:$0xff]
        %v1021 = vld [vmem:[%s573 + $0x70] sm:$0xff]
        %v1022 = vld [vmem:[%s573 + $0x78] sm:$0xff]
        %v1023 = vld [vmem:[%s648] sm:$0x1]
        %v1025 = vlaneseq
        %v1026 = vshrl.u32 %v1025, 7
        %v1027 = vsub.s32 0, %v1026
        %v1028 = vrot.slane %v1023, %v1027
        %1030 = vmatprep.subr.mxu0 0.0
        %1031 = vmatpush1.msra.mxu0 %v1022
        %1032 = vmatprep.subr.mxu0 0.0
        %1033 = vmatpush1.msra.mxu0 %v1021
        %1034 = vmatprep.subr.mxu0 0.0
        %1035 = vmatpush1.msra.mxu0 %v1020
        %1036 = vmatprep.subr.mxu0 0.0
        %1037 = vmatpush1.msra.mxu0 %v1019
        %1038 = vmatprep.subr.mxu0 0.0
        %1039 = vmatpush1.msra.mxu0 %v1018
        %1040 = vmatprep.subr.mxu0 0.0
        %1041 = vmatpush1.msra.mxu0 %v1017
        %1042 = vmatprep.subr.mxu0 0.0
        %1043 = vmatpush1.msra.mxu0 %v1016
        %1044 = vmatprep.subr.mxu0 0.0
        %1045 = vmatpush1.msra.mxu0 %v1015
        %1046 = vmatprep.subr.mxu0 0.0
        %1047 = vmatpush1.msra.mxu0 %v1014
        %1048 = vmatprep.subr.mxu0 0.0
        %1049 = vmatpush1.msra.mxu0 %v1013
        %1050 = vmatprep.subr.mxu0 0.0
        %1051 = vmatpush1.msra.mxu0 %v1012
        %1052 = vmatprep.subr.mxu0 0.0
        %1053 = vmatpush1.msra.mxu0 %v1011
        %1054 = vmatprep.subr.mxu0 0.0
        %1055 = vmatpush1.msra.mxu0 %v1010
        %1056 = vmatprep.subr.mxu0 0.0
        %1057 = vmatpush1.msra.mxu0 %v1009
        %1058 = vmatprep.subr.mxu0 0.0
        %1059 = vmatpush1.msra.mxu0 %v1008
        %1060 = vmatprep.subr.mxu0 0.0
        %1061 = vmatpush1.msra.mxu0 %v1007
        %1062 = vmatprep.subr.mxu0 0.0
        %1063 = vmatpush2.msra.mxu0 0.0
        %1064 = vmatprep.subr.mxu0 0.0
        %1065 = vmatpush2.msra.mxu0 0.0
        %1066 = vmatprep.subr.mxu0 0.0
        %1067 = vmatpush2.msra.mxu0 0.0
        %1068 = vmatprep.subr.mxu0 0.0
        %1069 = vmatpush2.msra.mxu0 0.0
        %1070 = vmatprep.subr.mxu0 0.0
        %1071 = vmatpush2.msra.mxu0 0.0
        %1072 = vmatprep.subr.mxu0 0.0
        %1073 = vmatpush2.msra.mxu0 0.0
        %1074 = vmatprep.subr.mxu0 0.0
        %1075 = vmatpush2.msra.mxu0 0.0
        %1076 = vmatprep.subr.mxu0 0.0
        %1077 = vmatpush2.msra.mxu0 0.0
        %1078 = vmatprep.subr.mxu0 0.0
        %1079 = vmatpush2.msra.mxu0 0.0
        %1080 = vmatprep.subr.mxu0 0.0
        %1081 = vmatpush2.msra.mxu0 0.0
        %1082 = vmatprep.subr.mxu0 0.0
        %1083 = vmatpush2.msra.mxu0 0.0
        %1084 = vmatprep.subr.mxu0 0.0
        %1085 = vmatpush2.msra.mxu0 0.0
        %1086 = vmatprep.subr.mxu0 0.0
        %1087 = vmatpush2.msra.mxu0 0.0
        %1088 = vmatprep.subr.mxu0 0.0
        %1089 = vmatpush2.msra.mxu0 0.0
        %1090 = vmatprep.subr.mxu0 0.0
        %1091 = vmatpush2.msra.mxu0 0.0
        %1092 = vmatprep.subr.mxu0 0.0
        %1093 = vmatpush2.msra.mxu0 0.0
        %1094 = vmatprep.mubr.f32.mxu0 0.0
        %1095 = vmatmul.mubr.f32.gmra.mxu0 %v1005
        %v1096 = vpop.f32.mrf.mxu0
        %v1097 = vadd.f32 %v1028, %v1096
        %v1098 = vpop.f32.mrf.mxu0
        %1099 = vmatprep.mubr.f32.mxu0 0.0
        %1100 = vmatmul.mubr.f32.gmra.mxu0 %v1006
        %v1101 = vpop.f32.mrf.mxu0
        %v1102 = vadd.f32 %v1028, %v1101
        %v1103 = vpop.f32.mrf.mxu0
        %1104 = vdwg.mxu0
        %p1105 = scmp.lt.s32.totalorder %s35, 2
        // Predicated region
        $region97: #{tpu_custom_call.1} parent=75 // pred_check
          %p1106 = pneg %p1105
        $region98: #{tpu_custom_call.1} parent=75 // pred_check_branch
          %1108 = sbr.rel (%p1106) target = $region100
        $region99: #{tpu_custom_call.1} parent=75 // pred_region
          %v1109 = vmax.f32 %v1097, 0.0
          %v1110 = vmax.f32 %v1102, 0.0
          %1111 = vst [vmem:[#allocation10] sm:$0xff] %v1109
          %1112 = vst [vmem:[#allocation10 + $0x8] sm:$0xff] %v1110
        $region100: #{tpu_custom_call.1} parent=75 // pred_fallthru
          _
        %p1113 = scmp.eq.s32.totalorder %s35, 2
        // Predicated region
        $region101: #{tpu_custom_call.1} parent=75 // pred_check
          %p1114 = pneg %p1113
        $region102: #{tpu_custom_call.1} parent=75 // pred_check_branch
          %1116 = sbr.rel (%p1114) target = $region104
        $region103: #{tpu_custom_call.1} parent=75 // pred_region
          %1117 = vst [vmem:[#allocation10] sm:$0xff] %v1097
          %1118 = vst [vmem:[#allocation10 + $0x8] sm:$0xff] %v1102
          %v1119 = vld [vmem:[%s4] sm:$0xf]
          %v1120 = vpack.c.bf16 %v1102, %v1097
          %v1122 = vsel %vm785, %v1119, 0
          %1124 = vmatprep.subr.bf16.mxu0 0
          %1125 = vmatpush1.bf16.msra.mxu0 0
          %1126 = vmatprep.subr.bf16.mxu0 0
          %1127 = vmatpush1.bf16.msra.mxu0 0
          %1128 = vmatprep.subr.bf16.mxu0 0
          %1129 = vmatpush1.bf16.msra.mxu0 0
          %1130 = vmatprep.subr.bf16.mxu0 0
          %1131 = vmatpush1.bf16.msra.mxu0 0
          %1132 = vmatprep.subr.bf16.mxu0 0
          %1133 = vmatpush1.bf16.msra.mxu0 0
          %1134 = vmatprep.subr.bf16.mxu0 0
          %1135 = vmatpush1.bf16.msra.mxu0 0
          %1136 = vmatprep.subr.bf16.mxu0 0
          %1137 = vmatpush1.bf16.msra.mxu0 0
          %1138 = vmatprep.subr.bf16.mxu0 0
          %1139 = vmatpush1.bf16.msra.mxu0 %v1120
          %1140 = vmatprep.subr.bf16.mxu0 0
          %1141 = vmatpush2.bf16.msra.mxu0 0
          %1142 = vmatprep.subr.bf16.mxu0 0
          %1143 = vmatpush2.bf16.msra.mxu0 0
          %1144 = vmatprep.subr.bf16.mxu0 0
          %1145 = vmatpush2.bf16.msra.mxu0 0
          %1146 = vmatprep.subr.bf16.mxu0 0
          %1147 = vmatpush2.bf16.msra.mxu0 0
          %1148 = vmatprep.subr.bf16.mxu0 0
          %1149 = vmatpush2.bf16.msra.mxu0 0
          %1150 = vmatprep.subr.bf16.mxu0 0
          %1151 = vmatpush2.bf16.msra.mxu0 0
          %1152 = vmatprep.subr.bf16.mxu0 0
          %1153 = vmatpush2.bf16.msra.mxu0 0
          %1154 = vmatprep.subr.bf16.mxu0 0
          %1155 = vmatpush2.bf16.msra.mxu0 0
          %1156 = vmatprep.mubr.bf16.mxu0 0
          %1157 = vmatmul.mubr.bf16.gmra.mxu0 %v1122
          %v1158 = vpop.f32.mrf.mxu0
          %v1159 = vadd.f32 0.0, %v1158
          %v1160 = vpop.f32.mrf.mxu0
          %v1161 = vpop.f32.mrf.mxu0
          %v1162 = vpop.f32.mrf.mxu0
          %1163 = vdwg.mxu0
          %v1164 = vld [vmem:[#allocation2] sm:$0xff]
          %v1165 = vld [vmem:[#allocation2 + $0x8] sm:$0xff]
          %v1166 = vld [vmem:[#allocation2 + $0x10] sm:$0xff]
          %v1167 = vld [vmem:[#allocation2 + $0x18] sm:$0xff]
          %v1168 = vld [vmem:[#allocation2 + $0x20] sm:$0xff]
          %v1169 = vld [vmem:[#allocation2 + $0x28] sm:$0xff]
          %v1170 = vld [vmem:[#allocation2 + $0x30] sm:$0xff]
          %v1171 = vld [vmem:[#allocation2 + $0x38] sm:$0xff]
          %v1172 = vld [vmem:[#allocation2 + $0x40] sm:$0xff]
          %v1173 = vld [vmem:[#allocation2 + $0x48] sm:$0xff]
          %v1174 = vld [vmem:[#allocation2 + $0x50] sm:$0xff]
          %v1175 = vld [vmem:[#allocation2 + $0x58] sm:$0xff]
          %v1176 = vld [vmem:[#allocation2 + $0x60] sm:$0xff]
          %v1177 = vld [vmem:[#allocation2 + $0x68] sm:$0xff]
          %v1178 = vld [vmem:[#allocation2 + $0x70] sm:$0xff]
          %v1179 = vld [vmem:[#allocation2 + $0x78] sm:$0xff]
          %v1180 = vld [vmem:[%s6] sm:$0x1]
          %v1182 = vlaneseq
          %v1183 = vshrl.u32 %v1182, 7
          %v1184 = vsub.s32 0, %v1183
          %v1185 = vrot.slane %v1180, %v1184
          %1187 = vmatprep.subr.mxu0 0.0
          %1188 = vmatpush1.msra.mxu0 %v1179
          %1189 = vmatprep.subr.mxu0 0.0
          %1190 = vmatpush1.msra.mxu0 %v1178
          %1191 = vmatprep.subr.mxu0 0.0
          %1192 = vmatpush1.msra.mxu0 %v1177
          %1193 = vmatprep.subr.mxu0 0.0
          %1194 = vmatpush1.msra.mxu0 %v1176
          %1195 = vmatprep.subr.mxu0 0.0
          %1196 = vmatpush1.msra.mxu0 %v1175
          %1197 = vmatprep.subr.mxu0 0.0
          %1198 = vmatpush1.msra.mxu0 %v1174
          %1199 = vmatprep.subr.mxu0 0.0
          %1200 = vmatpush1.msra.mxu0 %v1173
          %1201 = vmatprep.subr.mxu0 0.0
          %1202 = vmatpush1.msra.mxu0 %v1172
          %1203 = vmatprep.subr.mxu0 0.0
          %1204 = vmatpush1.msra.mxu0 %v1171
          %1205 = vmatprep.subr.mxu0 0.0
          %1206 = vmatpush1.msra.mxu0 %v1170
          %1207 = vmatprep.subr.mxu0 0.0
          %1208 = vmatpush1.msra.mxu0 %v1169
          %1209 = vmatprep.subr.mxu0 0.0
          %1210 = vmatpush1.msra.mxu0 %v1168
          %1211 = vmatprep.subr.mxu0 0.0
          %1212 = vmatpush1.msra.mxu0 %v1167
          %1213 = vmatprep.subr.mxu0 0.0
          %1214 = vmatpush1.msra.mxu0 %v1166
          %1215 = vmatprep.subr.mxu0 0.0
          %1216 = vmatpush1.msra.mxu0 %v1165
          %1217 = vmatprep.subr.mxu0 0.0
          %1218 = vmatpush1.msra.mxu0 %v1164
          %1219 = vmatprep.subr.mxu0 0.0
          %1220 = vmatpush2.msra.mxu0 0.0
          %1221 = vmatprep.subr.mxu0 0.0
          %1222 = vmatpush2.msra.mxu0 0.0
          %1223 = vmatprep.subr.mxu0 0.0
          %1224 = vmatpush2.msra.mxu0 0.0
          %1225 = vmatprep.subr.mxu0 0.0
          %1226 = vmatpush2.msra.mxu0 0.0
          %1227 = vmatprep.subr.mxu0 0.0
          %1228 = vmatpush2.msra.mxu0 0.0
          %1229 = vmatprep.subr.mxu0 0.0
          %1230 = vmatpush2.msra.mxu0 0.0
          %1231 = vmatprep.subr.mxu0 0.0
          %1232 = vmatpush2.msra.mxu0 0.0
          %1233 = vmatprep.subr.mxu0 0.0
          %1234 = vmatpush2.msra.mxu0 0.0
          %1235 = vmatprep.subr.mxu0 0.0
          %1236 = vmatpush2.msra.mxu0 0.0
          %1237 = vmatprep.subr.mxu0 0.0
          %1238 = vmatpush2.msra.mxu0 0.0
          %1239 = vmatprep.subr.mxu0 0.0
          %1240 = vmatpush2.msra.mxu0 0.0
          %1241 = vmatprep.subr.mxu0 0.0
          %1242 = vmatpush2.msra.mxu0 0.0
          %1243 = vmatprep.subr.mxu0 0.0
          %1244 = vmatpush2.msra.mxu0 0.0
          %1245 = vmatprep.subr.mxu0 0.0
          %1246 = vmatpush2.msra.mxu0 0.0
          %1247 = vmatprep.subr.mxu0 0.0
          %1248 = vmatpush2.msra.mxu0 0.0
          %1249 = vmatprep.subr.mxu0 0.0
          %1250 = vmatpush2.msra.mxu0 0.0
          %1251 = vmatprep.mubr.f32.mxu0 0.0
          %1252 = vmatmul.mubr.f32.gmra.mxu0 %v1159
          %v1253 = vpop.f32.mrf.mxu0
          %v1254 = vadd.f32 %v1185, %v1253
          %v1255 = vpop.f32.mrf.mxu0
          %1256 = vdwg.mxu0
          %1257 = vmax.xlane.f32.xlu0 %v1254
          %v1258 = vpop.xlane.xlu0 %1257
          %v1259 = vsub.f32 %v1254, %v1258
          %v1260 = vmul.f32 %v1259, 1.442695
          %v1261 = vpow.pop %v1260
          %1262 = vadd.xlane.f32.xlu0 %v1261
          %v1263 = vpop.xlane.xlu0 %1262
          %v1264 = vlog2.pop %v1263
          %v1265 = vmul.f32 %v1264, 0.6931472
          %v1266 = vsub.f32 %v1259, %v1265
          %1267 = vst [vmem:[#allocation11] sm:$0xff] %v1266
          %1268 = vst [vmem:[#allocation13] sm:$0xff] %v1159
        $region104: #{tpu_custom_call.1} parent=75 // pred_fallthru
          _
        // Predicated region
        $region105: #{tpu_custom_call.1} parent=75 // pred_check
          %p1269 = pneg %p372
        $region106: #{tpu_custom_call.1} parent=75 // pred_check_branch
          %1271 = sbr.rel (%p1269) target = $region108
        $region107: #{tpu_custom_call.1} parent=75 // pred_region
          %s1273 = ssub.s32 256, 256
          %1274 = vsyncadd [#allocation4], %s1273
          %s1275 = sshll.u32 [#allocation10], 4
          %s1276 = int_to_ptr.vmem [resolvable:$true] %s1275
          %1281 = dma.vmem_to_hbm [thread:$0]  %s1276, 256, %s14, [#allocation4], 128, 128, 8
        $region108: #{tpu_custom_call.1} parent=75 // pred_fallthru
          _
        // Predicated region
        $region109: #{tpu_custom_call.1} parent=75 // pred_check
          %p1282 = pneg %p393
        $region110: #{tpu_custom_call.1} parent=75 // pred_check_branch
          %1284 = sbr.rel (%p1282) target = $region112
        $region111: #{tpu_custom_call.1} parent=75 // pred_region
          %s1286 = ssub.s32 128, 128
          %1287 = vsyncadd [#allocation12], %s1286
          %s1289 = sshll.u32 [#allocation11], 4
          %s1290 = int_to_ptr.vmem [resolvable:$true] %s1289
          %1292 = dma.vmem_to_hbm [thread:$0]  %s1290, 128, %s15, [#allocation12]
        $region112: #{tpu_custom_call.1} parent=75 // pred_fallthru
          _
        // Predicated region
        $region113: #{tpu_custom_call.1} parent=75 // pred_check
          %p1293 = pneg %p414
        $region114: #{tpu_custom_call.1} parent=75 // pred_check_branch
          %1295 = sbr.rel (%p1293) target = $region116
        $region115: #{tpu_custom_call.1} parent=75 // pred_region
          %s1297 = ssub.s32 128, 128
          %1298 = vsyncadd [#allocation12], %s1297
          %s1300 = sshll.u32 [#allocation13], 4
          %s1301 = int_to_ptr.vmem [resolvable:$true] %s1300
          %1303 = dma.vmem_to_hbm [thread:$0]  %s1301, 128, %s16, [#allocation12]
        $region116: #{tpu_custom_call.1} parent=75 // pred_fallthru
          _
        // Predicated region
        $region117: #{tpu_custom_call.1} parent=75 // pred_check
          %p1304 = pneg %p372
        $region118: #{tpu_custom_call.1} parent=75 // pred_check_branch
          %1306 = sbr.rel (%p1304) target = $region120
        $region119: #{tpu_custom_call.1} parent=75 // pred_region
          %1307 = dma.done [#allocation4], 256
        $region120: #{tpu_custom_call.1} parent=75 // pred_fallthru
          _
        // Predicated region
        $region121: #{tpu_custom_call.1} parent=75 // pred_check
          %p1308 = pneg %p393
        $region122: #{tpu_custom_call.1} parent=75 // pred_check_branch
          %1310 = sbr.rel (%p1308) target = $region124
        $region123: #{tpu_custom_call.1} parent=75 // pred_region
          %1311 = dma.done [#allocation12], 128
        $region124: #{tpu_custom_call.1} parent=75 // pred_fallthru
          _
        // Predicated region
        $region125: #{tpu_custom_call.1} parent=75 // pred_check
          %p1312 = pneg %p414
        $region126: #{tpu_custom_call.1} parent=75 // pred_check_branch
          %1314 = sbr.rel (%p1312) target = $region128
        $region127: #{tpu_custom_call.1} parent=75 // pred_region
          %1315 = dma.done [#allocation12], 128
        $region128: #{tpu_custom_call.1} parent=75 // pred_fallthru
          _
      $region76: #{tpu_custom_call.1} parent=5 // pred_fallthru
        _
      %p1316 = scmp.le.s32.totalorder 2, %s30
      // Predicated region
      $region129: #{tpu_custom_call.1} parent=5 // pred_check
        %p1317 = pneg %p1316
      $region130: #{tpu_custom_call.1} parent=5 // pred_check_branch
        %1319 = sbr.rel (%p1317) target = $region132
      $region131: #{tpu_custom_call.1} parent=5 // pred_region
        %s1320 = ssub.s32 %s30, 2
      $region132: #{tpu_custom_call.1} parent=5 // pred_fallthru
        _
    $region6: #{tpu_custom_call.1} parent=1 // loop_footer
      %s34 = sadd.s32 1, %s30
    $region7: #{tpu_custom_call.1} parent=1 // loop_footer_branch
      %29 = sbr.rel target = $region3
    $region8: #{tpu_custom_call.1} parent=1 // loop_exit
      _
    %1321 = vsyncpa [#allocation3], 1
    %s1322 = scalar_lea.sflag [#allocation3], 1
    %1323 = vsyncpa %s1322, 1
    %1324 = vsyncpa [#allocation8], 1
    %s1325 = scalar_lea.sflag [#allocation8], 1
    %1326 = vsyncpa %s1325, 1
    %1327 = vsyncpa [#allocation4], 1
    %s1328 = scalar_lea.sflag [#allocation4], 1
    %1329 = vsyncpa %s1328, 1
    %1330 = vsyncpa [#allocation12], 1
    %1331 = vsyncpa [#allocation5], 1
    %s1332 = scalar_lea.sflag [#allocation5], 1
    %1333 = vsyncpa %s1332, 1

</llo_original>
